<compile_context>
chip_gen: v7x
topology: tpu7x:2x2x1
jax: 0.10.0
libtpu: 0.0.40
codegen_flags: <defaults>
</compile_context>

<pallas_src>
import functools

import jax
import jax.numpy as jnp
from jax.experimental import pallas as pl
from jax.experimental.pallas import tpu as pltpu

_EPS = 1e-5                      # nn.LayerNorm default eps
_SQRT_2_OVER_PI = 0.7978845608028654


def _gelu_tanh(x):
    # F.gelu(approximate='tanh'): the tanh goes to the EUP (its own bundle slot).
    inner = _SQRT_2_OVER_PI * (x + 0.044715 * (x * x * x))
    return 0.5 * x * (1.0 + jnp.tanh(inner))


def _round_up(v, m):
    return ((v + m - 1) // m) * m


def _block_kernel(x_ref,
                  avgc_ref, ln1w_ref, ln1b_ref,
                  w1_ref, b1_ref,
                  avgf_ref, ln2w_ref, ln2b_ref,
                  wmix_ref, bc_ref,
                  w2_ref, b2_ref,
                  out_ref, *, nf):
    f32 = jnp.float32
    x = x_ref[...].astype(f32)                      # (T, N*C), lane-dense

    # ---- pre-norm LayerNorm(d_model): per-node (32-lane segment) stats -------
    # Segment mean / variance via block-diagonal averaging matmuls
    # (avg_C = I_N (x) 11^T/C): the MXU does the cross-lane reduction AND the
    # broadcast back in one op, keeping everything 256-lane dense.
    mu = jnp.dot(x, avgc_ref[...], preferred_element_type=f32)
    xc = x - mu
    var = jnp.dot(xc * xc, avgc_ref[...], preferred_element_type=f32)
    y = xc * jax.lax.rsqrt(var + _EPS) * ln1w_ref[...] + ln1b_ref[...]

    # ---- channel_proj1 + GELU -------------------------------------------------
    # W1 = [I_N (x) w1[:, :F] | I_N (x) w1[:, F:]]  -> u-half / v-half contiguous
    h = jnp.dot(y, w1_ref[...], preferred_element_type=f32) + b1_ref[...]
    h = _gelu_tanh(h)                               # (T, 2*N*F), full-lane VPU/EUP
    u = h[:, :nf]                                   # 128-lane-aligned static slices
    v = h[:, nf:]

    # ---------------- SpatialGatingUnit ----------------
    # v = self.norm(v)   (LayerNorm(d_ffn), per-node segment stats)
    mv = jnp.dot(v, avgf_ref[...], preferred_element_type=f32)
    vc = v - mv
    vv = jnp.dot(vc * vc, avgf_ref[...], preferred_element_type=f32)
    vn = vc * jax.lax.rsqrt(vv + _EPS) * ln2w_ref[...] + ln2b_ref[...]
    # spatial_proj = Conv2d(num_node, num_node, 1) over the node axis, expressed
    # as ONE lane-dense MXU matmul against wc^T (x) I_F; bias (init 1.0) added
    # pre-broadcast per node block.
    z = jnp.dot(vn, wmix_ref[...], preferred_element_type=f32) + bc_ref[...]
    g = u * z                                       # residual=None path: out = u * x
    # -------------- end SpatialGatingUnit ---------------

    # channel_proj2 (I_N (x) w2) + block residual; full-lane unmasked store.
    o = jnp.dot(g, w2_ref[...], preferred_element_type=f32) + b2_ref[...]
    out_ref[...] = (o + x).astype(out_ref.dtype)


def _pack_params(params, n_node, d_model, d_ffn):
    """Host-side packing into lane-dense block-diagonal / Kronecker operands."""
    f32 = jnp.float32
    N, C, F = n_node, d_model, d_ffn
    eye_n = jnp.eye(N, dtype=f32)

    w1 = params["w1"].astype(f32)                   # (C, 2F)
    w2 = params["w2"].astype(f32)                   # (F, C)
    wc = params["wc"].astype(f32)                   # (N, N)
    b1 = params["b1"].reshape(-1).astype(f32)       # (2F,)

    avg_c = jnp.kron(eye_n, jnp.full((C, C), 1.0 / C, f32))            # (N*C, N*C)
    avg_f = jnp.kron(eye_n, jnp.full((F, F), 1.0 / F, f32))            # (N*F, N*F)
    w1_big = jnp.concatenate([jnp.kron(eye_n, w1[:, :F]),
                              jnp.kron(eye_n, w1[:, F:])], axis=1)     # (N*C, 2*N*F)
    wmix = jnp.kron(wc.T, jnp.eye(F, dtype=f32))                       # (N*F, N*F)
    w2_big = jnp.kron(eye_n, w2)                                       # (N*F, N*C)

    return [
        avg_c,
        jnp.tile(params["ln1_w"].reshape(-1).astype(f32), N).reshape(1, N * C),
        jnp.tile(params["ln1_b"].reshape(-1).astype(f32), N).reshape(1, N * C),
        w1_big,
        jnp.concatenate([jnp.tile(b1[:F], N),
                         jnp.tile(b1[F:], N)]).reshape(1, 2 * N * F),
        avg_f,
        jnp.tile(params["ln2_w"].reshape(-1).astype(f32), N).reshape(1, N * F),
        jnp.tile(params["ln2_b"].reshape(-1).astype(f32), N).reshape(1, N * F),
        wmix,
        jnp.repeat(params["bc"].reshape(-1).astype(f32), F).reshape(1, N * F),
        w2_big,
        jnp.tile(params["b2"].reshape(-1).astype(f32), N).reshape(1, N * C),
    ]


def cy2mixer_block_aff(x, params, *, tile_rows=512, vmem_limit_bytes=None):
    """x: (B, S, num_node, d_model).  params in the same layout as before."""
    B, S, N, C = x.shape
    F = params["w2"].shape[0]                       # d_ffn
    NC, NF, N2F = N * C, N * F, 2 * N * F
    BS = B * S

    # Tile selection: sublane-aligned (multiple of 8) and capped at ceil(BS/2)
    # so the "parallel" axis has >= 2 grid steps whenever there is enough work
    # (keeps v7x's second TensorCore busy).  tile_rows is the sweep knob.
    half = _round_up(pl.cdiv(BS, 2), 8)
    T = max(8, min(_round_up(tile_rows, 8), half))
    G = pl.cdiv(BS, T)
    BS_pad = G * T

    xf = x.reshape(BS, NC)                          # fold node axis into lanes (free)
    if BS_pad != BS:
        xf = jnp.pad(xf, ((0, BS_pad - BS), (0, 0)))

    p_args = _pack_params(params, N, C, F)
    param_bytes = 4 * sum(int(p.size) for p in p_args)

    if vmem_limit_bytes is None:
        # Lane-dense f32 footprint (no (8,128) tile-padding waste): double-
        # buffered in/out blocks + a generous bound on live temporaries + 2x
        # resident params; clamped to stay inside v7x's 64 MiB physical VMEM.
        act_bytes = 4 * T * (4 * NC + 2 * N2F + 8 * NC)
        vmem_limit_bytes = min(64 * 1024 * 1024,
                               max(24 * 1024 * 1024,
                                   int(1.25 * (act_bytes + 2 * param_bytes))))

    def _resident(p):                               # constant index_map -> resident
        nd = p.ndim
        return pl.BlockSpec(p.shape, lambda i, _nd=nd: (0,) * _nd)

    in_specs = [pl.BlockSpec((T, NC), lambda i: (i, 0))]
    in_specs += [_resident(p) for p in p_args]

    flops = 2 * BS_pad * (2 * NC * NC + NC * N2F + 3 * NF * NF + NF * NC) \
        + 30 * BS_pad * NC
    cost = pl.CostEstimate(
        flops=int(flops),
        transcendentals=int(BS_pad * (N2F + NC + NF)),
        bytes_accessed=int(4 * 2 * BS_pad * NC + param_bytes))

    kernel = functools.partial(_block_kernel, nf=NF)
    out = pl.pallas_call(
        kernel,
        out_shape=jax.ShapeDtypeStruct((BS_pad, NC), x.dtype),
        grid_spec=pltpu.PrefetchScalarGridSpec(
            num_scalar_prefetch=0,
            grid=(G,),
            in_specs=in_specs,
            out_specs=pl.BlockSpec((T, NC), lambda i: (i, 0)),
        ),
        compiler_params=pltpu.CompilerParams(
            dimension_semantics=("parallel",),
            vmem_limit_bytes=int(vmem_limit_bytes),
        ),
        cost_estimate=cost,
    )(xf, *p_args)
    return out[:BS].reshape(B, S, N, C)


def _reference(x, p, *, approximate_gelu):
    # Pure-JAX reference of the PyTorch forward (use_tinyatt=False, conv, ks=1),
    # run at HIGHEST matmul precision so it is the accuracy "gold".
    HI = jax.lax.Precision.HIGHEST

    def ln(v, w, b):
        mu = v.mean(-1, keepdims=True)
        var = ((v - mu) ** 2).mean(-1, keepdims=True)
        return (v - mu) / jnp.sqrt(var + _EPS) * w + b

    d_ffn = p["w2"].shape[0]
    residual = x
    y = ln(x, p["ln1_w"][0], p["ln1_b"][0])
    h = jax.nn.gelu(jnp.dot(y, p["w1"], precision=HI) + p["b1"][0],
                    approximate=approximate_gelu)
    u, v = h[..., :d_ffn], h[..., d_ffn:]
    v = ln(v, p["ln2_w"][0], p["ln2_b"][0])
    z = jnp.einsum("oi,bsif->bsof", p["wc"], v, precision=HI) \
        + p["bc"][:, 0][None, None, :, None]
    g = u * z
    o = jnp.dot(g, p["w2"], precision=HI) + p["b2"][0]
    return o + residual


if __name__ == "__main__":
    # Small shapes; B*S=18 exercises the multi-step grid (G=2) and row padding.
    B, S, N, d_model, d_ffn = 2, 9, 8, 32, 32
    f32 = jnp.float32
    ks = jax.random.split(jax.random.PRNGKey(0), 6)

    # Shapes from the module __init__:
    #   channel_proj1: Linear(d_model, 2*d_ffn) -> stored transposed (d_model, 2*d_ffn)
    #   channel_proj2: Linear(d_ffn, d_model)   -> stored transposed (d_ffn, d_model)
    #   sgu.spatial_proj: Conv2d(num_node, num_node, 1), bias init'd to 1.0
    params = dict(
        ln1_w=jnp.ones((1, d_model), f32),
        ln1_b=jnp.zeros((1, d_model), f32),
        w1=jax.random.normal(ks[0], (d_model, 2 * d_ffn), f32) * 0.05,
        b1=jax.random.normal(ks[1], (1, 2 * d_ffn), f32) * 0.05,
        ln2_w=jnp.ones((1, d_ffn), f32),
        ln2_b=jnp.zeros((1, d_ffn), f32),
        wc=jax.random.normal(ks[2], (N, N), f32) * 0.1,
        bc=jnp.ones((N, 1), f32),       # nn.init.constant_(spatial_proj.bias, 1.0)
        w2=jax.random.normal(ks[3], (d_ffn, d_model), f32) * 0.05,
        b2=jax.random.normal(ks[4], (1, d_model), f32) * 0.05,
    )
    x = jax.random.normal(ks[5], (B, S, N, d_model), f32)

    out = jax.block_until_ready(cy2mixer_block_aff(x, params))

    # (1) formulation-matched reference (tanh GELU): tolerance covers only the
    #     difference in f32-matmul pass counts between Mosaic and XLA.
    ref_tanh = _reference(x, params, approximate_gelu=True)
    err_tanh = float(jnp.max(jnp.abs(out - ref_tanh)))
    assert err_tanh < 3e-3, f"kernel vs tanh-GELU reference: max abs err = {err_tanh}"

    # (2) exact PyTorch semantics (erf GELU, F.gelu default): additionally
    #     budgets the documented tanh-vs-erf GELU deviation (<= ~1e-3 here).
    ref_erf = _reference(x, params, approximate_gelu=False)
    err_erf = float(jnp.max(jnp.abs(out - ref_erf)))
    assert err_erf < 6e-3, f"kernel vs exact-GELU reference: max abs err = {err_erf}"

    print("KERNEL_OK")
</pallas_src>

<mosaic_0001>
module attributes {stable_mosaic.version = 11 : i64} {
  func.func @_block_kernel(%arg0: i32, %arg1: memref<16x256xf32, #tpu.memory_space<vmem>>, %arg2: memref<256x256xf32, #tpu.memory_space<vmem>>, %arg3: memref<1x256xf32, #tpu.memory_space<vmem>>, %arg4: memref<1x256xf32, #tpu.memory_space<vmem>>, %arg5: memref<256x512xf32, #tpu.memory_space<vmem>>, %arg6: memref<1x512xf32, #tpu.memory_space<vmem>>, %arg7: memref<256x256xf32, #tpu.memory_space<vmem>>, %arg8: memref<1x256xf32, #tpu.memory_space<vmem>>, %arg9: memref<1x256xf32, #tpu.memory_space<vmem>>, %arg10: memref<256x256xf32, #tpu.memory_space<vmem>>, %arg11: memref<1x256xf32, #tpu.memory_space<vmem>>, %arg12: memref<256x256xf32, #tpu.memory_space<vmem>>, %arg13: memref<1x256xf32, #tpu.memory_space<vmem>>, %arg14: memref<16x256xf32, #tpu.memory_space<vmem>>) attributes {dimension_semantics = [#tpu.dimension_semantics<parallel>], iteration_bounds = array<i64: 2>, scalar_prefetch = 0 : i64, scratch_operands = 0 : i64, tpu.core_type = #tpu.core_type<tc>, window_params = [{transform_indices = @transform_0, window_bounds = array<i64: 16, 256>}, {pipeline_mode = #tpu.pipeline_mode<synchronous>, transform_indices = @transform_1, window_bounds = array<i64: 256, 256>}, {pipeline_mode = #tpu.pipeline_mode<synchronous>, transform_indices = @transform_2, window_bounds = array<i64: 1, 256>}, {pipeline_mode = #tpu.pipeline_mode<synchronous>, transform_indices = @transform_3, window_bounds = array<i64: 1, 256>}, {pipeline_mode = #tpu.pipeline_mode<synchronous>, transform_indices = @transform_4, window_bounds = array<i64: 256, 512>}, {pipeline_mode = #tpu.pipeline_mode<synchronous>, transform_indices = @transform_5, window_bounds = array<i64: 1, 512>}, {pipeline_mode = #tpu.pipeline_mode<synchronous>, transform_indices = @transform_6, window_bounds = array<i64: 256, 256>}, {pipeline_mode = #tpu.pipeline_mode<synchronous>, transform_indices = @transform_7, window_bounds = array<i64: 1, 256>}, {pipeline_mode = #tpu.pipeline_mode<synchronous>, transform_indices = @transform_8, window_bounds = array<i64: 1, 256>}, {pipeline_mode = #tpu.pipeline_mode<synchronous>, transform_indices = @transform_9, window_bounds = array<i64: 256, 256>}, {pipeline_mode = #tpu.pipeline_mode<synchronous>, transform_indices = @transform_10, window_bounds = array<i64: 1, 256>}, {pipeline_mode = #tpu.pipeline_mode<synchronous>, transform_indices = @transform_11, window_bounds = array<i64: 256, 256>}, {pipeline_mode = #tpu.pipeline_mode<synchronous>, transform_indices = @transform_12, window_bounds = array<i64: 1, 256>}, {transform_indices = @transform_13, window_bounds = array<i64: 16, 256>}]} {
    %c0 = arith.constant 0 : index
    %c0_0 = arith.constant 0 : index
    %0 = vector.load %arg1[%c0, %c0_0] : memref<16x256xf32, #tpu.memory_space<vmem>>, vector<16x256xf32>
    %c0_1 = arith.constant 0 : index
    %c0_2 = arith.constant 0 : index
    %1 = vector.load %arg2[%c0_1, %c0_2] : memref<256x256xf32, #tpu.memory_space<vmem>>, vector<256x256xf32>
    %cst = arith.constant dense<0.000000e+00> : vector<16x256xf32>
    %2 = tpu.matmul %0, %1, %cst {dimension_numbers = #tpu.dot_dimension_numbers<[1], [0], [0], [1], [0, 0, 1, 1], [], []>} : vector<16x256xf32>, vector<256x256xf32>, vector<16x256xf32> -> vector<16x256xf32>
    %3 = arith.subf %0, %2 : vector<16x256xf32>
    %4 = arith.mulf %3, %3 : vector<16x256xf32>
    %c0_3 = arith.constant 0 : index
    %c0_4 = arith.constant 0 : index
    %5 = vector.load %arg2[%c0_3, %c0_4] : memref<256x256xf32, #tpu.memory_space<vmem>>, vector<256x256xf32>
    %cst_5 = arith.constant dense<0.000000e+00> : vector<16x256xf32>
    %6 = tpu.matmul %4, %5, %cst_5 {dimension_numbers = #tpu.dot_dimension_numbers<[1], [0], [0], [1], [0, 0, 1, 1], [], []>} : vector<16x256xf32>, vector<256x256xf32>, vector<16x256xf32> -> vector<16x256xf32>
    %cst_6 = arith.constant 9.99999974E-6 : f32
    %7 = vector.broadcast %cst_6 : f32 to vector<16x256xf32>
    %8 = arith.addf %6, %7 : vector<16x256xf32>
    %9 = math.rsqrt %8 : vector<16x256xf32>
    %10 = arith.mulf %3, %9 : vector<16x256xf32>
    %c0_7 = arith.constant 0 : index
    %c0_8 = arith.constant 0 : index
    %11 = vector.load %arg3[%c0_7, %c0_8] : memref<1x256xf32, #tpu.memory_space<vmem>>, vector<1x256xf32>
    %12 = vector.broadcast %11 : vector<1x256xf32> to vector<16x256xf32>
    %13 = arith.mulf %10, %12 : vector<16x256xf32>
    %c0_9 = arith.constant 0 : index
    %c0_10 = arith.constant 0 : index
    %14 = vector.load %arg4[%c0_9, %c0_10] : memref<1x256xf32, #tpu.memory_space<vmem>>, vector<1x256xf32>
    %15 = vector.broadcast %14 : vector<1x256xf32> to vector<16x256xf32>
    %16 = arith.addf %13, %15 : vector<16x256xf32>
    %c0_11 = arith.constant 0 : index
    %c0_12 = arith.constant 0 : index
    %17 = vector.load %arg5[%c0_11, %c0_12] : memref<256x512xf32, #tpu.memory_space<vmem>>, vector<256x512xf32>
    %cst_13 = arith.constant dense<0.000000e+00> : vector<16x512xf32>
    %18 = tpu.matmul %16, %17, %cst_13 {dimension_numbers = #tpu.dot_dimension_numbers<[1], [0], [0], [1], [0, 0, 1, 1], [], []>} : vector<16x256xf32>, vector<256x512xf32>, vector<16x512xf32> -> vector<16x512xf32>
    %c0_14 = arith.constant 0 : index
    %c0_15 = arith.constant 0 : index
    %19 = vector.load %arg6[%c0_14, %c0_15] : memref<1x512xf32, #tpu.memory_space<vmem>>, vector<1x512xf32>
    %20 = vector.broadcast %19 : vector<1x512xf32> to vector<16x512xf32>
    %21 = arith.addf %18, %20 : vector<16x512xf32>
    %22 = arith.mulf %21, %21 : vector<16x512xf32>
    %23 = arith.mulf %22, %21 : vector<16x512xf32>
    %cst_16 = arith.constant 4.471500e-02 : f32
    %24 = vector.broadcast %cst_16 : f32 to vector<16x512xf32>
    %25 = arith.mulf %24, %23 : vector<16x512xf32>
    %26 = arith.addf %21, %25 : vector<16x512xf32>
    %cst_17 = arith.constant 0.797884583 : f32
    %27 = vector.broadcast %cst_17 : f32 to vector<16x512xf32>
    %28 = arith.mulf %27, %26 : vector<16x512xf32>
    %cst_18 = arith.constant 5.000000e-01 : f32
    %29 = vector.broadcast %cst_18 : f32 to vector<16x512xf32>
    %30 = arith.mulf %29, %21 : vector<16x512xf32>
    %31 = math.tanh %28 : vector<16x512xf32>
    %cst_19 = arith.constant 1.000000e+00 : f32
    %32 = vector.broadcast %cst_19 : f32 to vector<16x512xf32>
    %33 = arith.addf %32, %31 : vector<16x512xf32>
    %34 = arith.mulf %30, %33 : vector<16x512xf32>
    %35 = vector.extract_strided_slice %34 {offsets = [0, 0], sizes = [16, 256], strides = [1, 1]} : vector<16x512xf32> to vector<16x256xf32>
    %36 = vector.extract_strided_slice %34 {offsets = [0, 256], sizes = [16, 256], strides = [1, 1]} : vector<16x512xf32> to vector<16x256xf32>
    %c0_20 = arith.constant 0 : index
    %c0_21 = arith.constant 0 : index
    %37 = vector.load %arg7[%c0_20, %c0_21] : memref<256x256xf32, #tpu.memory_space<vmem>>, vector<256x256xf32>
    %cst_22 = arith.constant dense<0.000000e+00> : vector<16x256xf32>
    %38 = tpu.matmul %36, %37, %cst_22 {dimension_numbers = #tpu.dot_dimension_numbers<[1], [0], [0], [1], [0, 0, 1, 1], [], []>} : vector<16x256xf32>, vector<256x256xf32>, vector<16x256xf32> -> vector<16x256xf32>
    %39 = arith.subf %36, %38 : vector<16x256xf32>
    %40 = arith.mulf %39, %39 : vector<16x256xf32>
    %c0_23 = arith.constant 0 : index
    %c0_24 = arith.constant 0 : index
    %41 = vector.load %arg7[%c0_23, %c0_24] : memref<256x256xf32, #tpu.memory_space<vmem>>, vector<256x256xf32>
    %cst_25 = arith.constant dense<0.000000e+00> : vector<16x256xf32>
    %42 = tpu.matmul %40, %41, %cst_25 {dimension_numbers = #tpu.dot_dimension_numbers<[1], [0], [0], [1], [0, 0, 1, 1], [], []>} : vector<16x256xf32>, vector<256x256xf32>, vector<16x256xf32> -> vector<16x256xf32>
    %cst_26 = arith.constant 9.99999974E-6 : f32
    %43 = vector.broadcast %cst_26 : f32 to vector<16x256xf32>
    %44 = arith.addf %42, %43 : vector<16x256xf32>
    %45 = math.rsqrt %44 : vector<16x256xf32>
    %46 = arith.mulf %39, %45 : vector<16x256xf32>
    %c0_27 = arith.constant 0 : index
    %c0_28 = arith.constant 0 : index
    %47 = vector.load %arg8[%c0_27, %c0_28] : memref<1x256xf32, #tpu.memory_space<vmem>>, vector<1x256xf32>
    %48 = vector.broadcast %47 : vector<1x256xf32> to vector<16x256xf32>
    %49 = arith.mulf %46, %48 : vector<16x256xf32>
    %c0_29 = arith.constant 0 : index
    %c0_30 = arith.constant 0 : index
    %50 = vector.load %arg9[%c0_29, %c0_30] : memref<1x256xf32, #tpu.memory_space<vmem>>, vector<1x256xf32>
    %51 = vector.broadcast %50 : vector<1x256xf32> to vector<16x256xf32>
    %52 = arith.addf %49, %51 : vector<16x256xf32>
    %c0_31 = arith.constant 0 : index
    %c0_32 = arith.constant 0 : index
    %53 = vector.load %arg10[%c0_31, %c0_32] : memref<256x256xf32, #tpu.memory_space<vmem>>, vector<256x256xf32>
    %cst_33 = arith.constant dense<0.000000e+00> : vector<16x256xf32>
    %54 = tpu.matmul %52, %53, %cst_33 {dimension_numbers = #tpu.dot_dimension_numbers<[1], [0], [0], [1], [0, 0, 1, 1], [], []>} : vector<16x256xf32>, vector<256x256xf32>, vector<16x256xf32> -> vector<16x256xf32>
    %c0_34 = arith.constant 0 : index
    %c0_35 = arith.constant 0 : index
    %55 = vector.load %arg11[%c0_34, %c0_35] : memref<1x256xf32, #tpu.memory_space<vmem>>, vector<1x256xf32>
    %56 = vector.broadcast %55 : vector<1x256xf32> to vector<16x256xf32>
    %57 = arith.addf %54, %56 : vector<16x256xf32>
    %58 = arith.mulf %35, %57 : vector<16x256xf32>
    %c0_36 = arith.constant 0 : index
    %c0_37 = arith.constant 0 : index
    %59 = vector.load %arg12[%c0_36, %c0_37] : memref<256x256xf32, #tpu.memory_space<vmem>>, vector<256x256xf32>
    %cst_38 = arith.constant dense<0.000000e+00> : vector<16x256xf32>
    %60 = tpu.matmul %58, %59, %cst_38 {dimension_numbers = #tpu.dot_dimension_numbers<[1], [0], [0], [1], [0, 0, 1, 1], [], []>} : vector<16x256xf32>, vector<256x256xf32>, vector<16x256xf32> -> vector<16x256xf32>
    %c0_39 = arith.constant 0 : index
    %c0_40 = arith.constant 0 : index
    %61 = vector.load %arg13[%c0_39, %c0_40] : memref<1x256xf32, #tpu.memory_space<vmem>>, vector<1x256xf32>
    %62 = vector.broadcast %61 : vector<1x256xf32> to vector<16x256xf32>
    %63 = arith.addf %60, %62 : vector<16x256xf32>
    %64 = arith.addf %63, %0 : vector<16x256xf32>
    %c0_41 = arith.constant 0 : index
    %c0_42 = arith.constant 0 : index
    %65 = vector.load %arg14[%c0_41, %c0_42] : memref<16x256xf32, #tpu.memory_space<vmem>>, vector<16x256xf32>
    tpu.vector_store %arg14[%c0_41, %c0_42], %64 {strides = array<i32>} : memref<16x256xf32, #tpu.memory_space<vmem>>, vector<16x256xf32>,
    return
  }
  func.func @transform_0(%arg0: i32) -> (i32, i32) {
    %c0_i32 = arith.constant 0 : i32
    %c0_i32_0 = arith.constant 0 : i32
    return %arg0, %c0_i32 : i32, i32
  }
  func.func @transform_1(%arg0: i32) -> (i32, i32) {
    %c0_i32 = arith.constant 0 : i32
    %c0_i32_0 = arith.constant 0 : i32
    %c0_i32_1 = arith.constant 0 : i32
    return %c0_i32, %c0_i32_0 : i32, i32
  }
  func.func @transform_2(%arg0: i32) -> (i32, i32) {
    %c0_i32 = arith.constant 0 : i32
    %c0_i32_0 = arith.constant 0 : i32
    %c0_i32_1 = arith.constant 0 : i32
    return %c0_i32, %c0_i32_0 : i32, i32
  }
  func.func @transform_3(%arg0: i32) -> (i32, i32) {
    %c0_i32 = arith.constant 0 : i32
    %c0_i32_0 = arith.constant 0 : i32
    %c0_i32_1 = arith.constant 0 : i32
    return %c0_i32, %c0_i32_0 : i32, i32
  }
  func.func @transform_4(%arg0: i32) -> (i32, i32) {
    %c0_i32 = arith.constant 0 : i32
    %c0_i32_0 = arith.constant 0 : i32
    %c0_i32_1 = arith.constant 0 : i32
    return %c0_i32, %c0_i32_0 : i32, i32
  }
  func.func @transform_5(%arg0: i32) -> (i32, i32) {
    %c0_i32 = arith.constant 0 : i32
    %c0_i32_0 = arith.constant 0 : i32
    %c0_i32_1 = arith.constant 0 : i32
    return %c0_i32, %c0_i32_0 : i32, i32
  }
  func.func @transform_6(%arg0: i32) -> (i32, i32) {
    %c0_i32 = arith.constant 0 : i32
    %c0_i32_0 = arith.constant 0 : i32
    %c0_i32_1 = arith.constant 0 : i32
    return %c0_i32, %c0_i32_0 : i32, i32
  }
  func.func @transform_7(%arg0: i32) -> (i32, i32) {
    %c0_i32 = arith.constant 0 : i32
    %c0_i32_0 = arith.constant 0 : i32
    %c0_i32_1 = arith.constant 0 : i32
    return %c0_i32, %c0_i32_0 : i32, i32
  }
  func.func @transform_8(%arg0: i32) -> (i32, i32) {
    %c0_i32 = arith.constant 0 : i32
    %c0_i32_0 = arith.constant 0 : i32
    %c0_i32_1 = arith.constant 0 : i32
    return %c0_i32, %c0_i32_0 : i32, i32
  }
  func.func @transform_9(%arg0: i32) -> (i32, i32) {
    %c0_i32 = arith.constant 0 : i32
    %c0_i32_0 = arith.constant 0 : i32
    %c0_i32_1 = arith.constant 0 : i32
    return %c0_i32, %c0_i32_0 : i32, i32
  }
  func.func @transform_10(%arg0: i32) -> (i32, i32) {
    %c0_i32 = arith.constant 0 : i32
    %c0_i32_0 = arith.constant 0 : i32
    %c0_i32_1 = arith.constant 0 : i32
    return %c0_i32, %c0_i32_0 : i32, i32
  }
  func.func @transform_11(%arg0: i32) -> (i32, i32) {
    %c0_i32 = arith.constant 0 : i32
    %c0_i32_0 = arith.constant 0 : i32
    %c0_i32_1 = arith.constant 0 : i32
    return %c0_i32, %c0_i32_0 : i32, i32
  }
  func.func @transform_12(%arg0: i32) -> (i32, i32) {
    %c0_i32 = arith.constant 0 : i32
    %c0_i32_0 = arith.constant 0 : i32
    %c0_i32_1 = arith.constant 0 : i32
    return %c0_i32, %c0_i32_0 : i32, i32
  }
  func.func @transform_13(%arg0: i32) -> (i32, i32) {
    %c0_i32 = arith.constant 0 : i32
    %c0_i32_0 = arith.constant 0 : i32
    return %arg0, %c0_i32 : i32, i32
  }
}

</mosaic_0001>

<llo_original>
// kernel: tpu_custom_call.1
$region0: #{tpu_custom_call.1}
  #allocation0 [shape = 'u32[]', space=smem, size = 0x4, offset = 0x4, fixed_abs, tag = 'smem constant byte address 0x4 - core index']
  #allocation1 [shape = 'u32[144,128]{1,0:T(1,128)}', space=vmem, size = 0x12000, scoped, tag = 'internal scratch']
  %s0 = inlined_call_operand.hbm [shape: f32[32,256], index: 0, kind: input, shape index: {}]
  %s1 = inlined_call_operand.hbm [shape: f32[256,256], index: 1, kind: input, shape index: {}]
  %s2 = inlined_call_operand.vmem [shape: f32[1,256], index: 2, kind: input, shape index: {}]
  %s3 = inlined_call_operand.vmem [shape: f32[1,256], index: 3, kind: input, shape index: {}]
  %s4 = inlined_call_operand.hbm [shape: f32[256,512], index: 4, kind: input, shape index: {}]
  %s5 = inlined_call_operand.vmem [shape: f32[1,512], index: 5, kind: input, shape index: {}]
  %s6 = inlined_call_operand.hbm [shape: f32[256,256], index: 6, kind: input, shape index: {}]
  %s7 = inlined_call_operand.vmem [shape: f32[1,256], index: 7, kind: input, shape index: {}]
  %s8 = inlined_call_operand.vmem [shape: f32[1,256], index: 8, kind: input, shape index: {}]
  %s9 = inlined_call_operand.hbm [shape: f32[256,256], index: 9, kind: input, shape index: {}]
  %s10 = inlined_call_operand.vmem [shape: f32[1,256], index: 10, kind: input, shape index: {}]
  %s11 = inlined_call_operand.hbm [shape: f32[256,256], index: 11, kind: input, shape index: {}]
  %s12 = inlined_call_operand.vmem [shape: f32[1,256], index: 12, kind: input, shape index: {}]
  %s13 = inlined_call_operand.hbm [shape: f32[32,256], index: 13, kind: output, shape index: {}]
  %s14 = sld [smem:[#allocation0]]
  $region109: #{tpu_custom_call.1} parent=0
    _
  %s16 = ssub.s32 1, %s14
  %s17 = scalar_select 0, %s16, %s14
  $region1: #{tpu_custom_call.1} parent=0
    #allocation2 [shape = 'u8[32768]{0}', space=vmem, size = 0x8000, scoped, tag = 'input window, operand 0']
    #allocation3 [shape = 's32[2]{0}', space=sflag, size = 0x8, scoped, tag = 'scoped memory for tpu_custom_call.1']
    #allocation4 [shape = 's32[2]{0}', space=sflag, size = 0x8, scoped, tag = 'scoped memory for tpu_custom_call.1']
    #allocation5 [shape = 'u8[262144]{0}', space=vmem, size = 0x40000, scoped, tag = 'input window, operand 1, single buffered']
    #allocation6 [shape = 's32[1]{0}', space=sflag, size = 0x4, scoped, tag = 'scoped memory for tpu_custom_call.1']
    #allocation7 [shape = 'u8[524288]{0}', space=vmem, size = 0x80000, scoped, tag = 'input window, operand 4, single buffered']
    #allocation8 [shape = 'u8[262144]{0}', space=vmem, size = 0x40000, scoped, tag = 'input window, operand 6, single buffered']
    #allocation9 [shape = 's32[1]{0}', space=sflag, size = 0x4, scoped, tag = 'scoped memory for tpu_custom_call.1']
    #allocation10 [shape = 'u8[262144]{0}', space=vmem, size = 0x40000, scoped, tag = 'input window, operand 9, single buffered']
    #allocation11 [shape = 'u8[262144]{0}', space=vmem, size = 0x40000, scoped, tag = 'input window, operand 11, single buffered']
    #allocation12 [shape = 's32[1]{0}', space=sflag, size = 0x4, scoped, tag = 'scoped memory for tpu_custom_call.1']
    #allocation13 [shape = 'u8[32768]{0}', space=vmem, size = 0x8000, scoped, tag = 'output window, operand 0']
    %18 = vsyncpa [#allocation3], 0
    %s19 = scalar_lea.sflag [#allocation3], 1
    %20 = vsyncpa %s19, 0
    %21 = vsyncpa [#allocation6], 0
    %22 = vsyncpa [#allocation9], 0
    %23 = vsyncpa [#allocation12], 0
    %24 = vsyncpa [#allocation4], 0
    %s25 = scalar_lea.sflag [#allocation4], 1
    %26 = vsyncpa %s25, 0
    loop: start=0, step=1, limit=4
    $region2: #{tpu_custom_call.1} parent=1 // loop_pre_header
      _
    $region3: #{tpu_custom_call.1} parent=1 // loop_header
      %s28 = sphi 0, %s32
      %p29 = scmp.ge.s32.totalorder %s28, 4
      %s38 = sphi 0, %s40
      %s41 = sphi 0, %s38
      %s42 = sphi 0, %s41
      %s58 = sphi 0, %s42
      %s62 = sphi 0, %s62
      %s64 = sphi 0, %s62
      %s65 = sphi 0, %s64
      %s79 = sphi 0, %s65
      %s83 = sphi 0, %s83
      %s85 = sphi 0, %s83
      %s86 = sphi 0, %s85
      %s100 = sphi 0, %s86
      %s104 = sphi 0, %s104
      %s106 = sphi 0, %s104
      %s107 = sphi 0, %s106
      %s121 = sphi 0, %s107
      %s125 = sphi 0, %s125
      %s127 = sphi 0, %s125
      %s128 = sphi 0, %s127
      %s142 = sphi 0, %s128
      %s146 = sphi 0, %s146
      %s148 = sphi 0, %s146
      %s149 = sphi 0, %s148
      %s163 = sphi 0, %s149
      %s167 = sphi 0, %s167
      %s169 = sphi 0, %s167
      %s170 = sphi 0, %s169
      %s184 = sphi 0, %s170
      %s188 = sphi 0, %s188
      %s190 = sphi 0, %s188
      %s191 = sphi 0, %s190
      %s205 = sphi 0, %s191
      %s209 = sphi 0, %s209
      %s211 = sphi 0, %s209
      %s212 = sphi 0, %s211
      %s226 = sphi 0, %s212
      %s230 = sphi 0, %s230
      %s232 = sphi 0, %s230
      %s233 = sphi 0, %s232
      %s247 = sphi 0, %s233
      %s251 = sphi 0, %s251
      %s253 = sphi 0, %s251
      %s254 = sphi 0, %s253
      %s268 = sphi 0, %s254
      %s272 = sphi 0, %s272
      %s274 = sphi 0, %s272
      %s275 = sphi 0, %s274
      %s289 = sphi 0, %s275
      %s293 = sphi 0, %s293
      %s295 = sphi 0, %s293
      %s296 = sphi 0, %s295
      %s310 = sphi 0, %s296
      %s316 = sphi 0, %s318
      %s319 = sphi 0, %s316
      %s320 = sphi 0, %s319
      %s336 = sphi 0, %s320
    $region4: #{tpu_custom_call.1} parent=1 // loop_header_branch
      %31 = sbr.rel (%p29) target = $region8
    $region5: #{tpu_custom_call.1} parent=1 // loop_body
      %s33 = ssub.s32 %s28, 1
      %s34 = ssub.s32 %s28, 2
      %s35 = sadd.s32 %s28, 1
      %s36 = ssub.s32 %s28, %s35
      %p37 = scmp.eq.s32.totalorder %s36, 0
      %s39 = sadd.s32 %s38, 1
      %s40 = scalar_select %p37, %s38, %s39
      %p43 = pneg %p37
      %p44 = scmp.eq.s32.totalorder %s28, 1
      %p45 = por %p43, %p44
      %p46 = scmp.ne.s32.totalorder %s38, %s41
      %p47 = scmp.eq.s32.totalorder %s28, 0
      %p48 = por %p46, %p47
      %p49 = scmp.ne.s32.totalorder %s38, %s41
      %p50 = scmp.eq.s32.totalorder %s33, 1
      %p51 = por %p49, %p50
      %p52 = scmp.ne.s32.totalorder %s41, %s42
      %p53 = scmp.eq.s32.totalorder %s33, 0
      %p54 = por %p52, %p53
      %p55 = scmp.ne.s32.totalorder %s41, %s42
      %p56 = scmp.eq.s32.totalorder %s34, 1
      %p57 = por %p55, %p56
      %p59 = scmp.ne.s32.totalorder %s42, %s58
      %p60 = scmp.eq.s32.totalorder %s34, 0
      %p61 = por %p59, %p60
      %s63 = sadd.s32 %s62, 1
      %p66 = scmp.eq.s32.totalorder %s28, 1
      %p67 = scmp.ne.s32.totalorder %s62, %s64
      %p68 = scmp.eq.s32.totalorder %s28, 0
      %p69 = por %p67, %p68
      %p70 = scmp.ne.s32.totalorder %s62, %s64
      %p71 = scmp.eq.s32.totalorder %s33, 1
      %p72 = por %p70, %p71
      %p73 = scmp.ne.s32.totalorder %s64, %s65
      %p74 = scmp.eq.s32.totalorder %s33, 0
      %p75 = por %p73, %p74
      %p76 = scmp.ne.s32.totalorder %s64, %s65
      %p77 = scmp.eq.s32.totalorder %s34, 1
      %p78 = por %p76, %p77
      %p80 = scmp.ne.s32.totalorder %s65, %s79
      %p81 = scmp.eq.s32.totalorder %s34, 0
      %p82 = por %p80, %p81
      %s84 = sadd.s32 %s83, 1
      %p87 = scmp.eq.s32.totalorder %s28, 1
      %p88 = scmp.ne.s32.totalorder %s83, %s85
      %p89 = scmp.eq.s32.totalorder %s28, 0
      %p90 = por %p88, %p89
      %p91 = scmp.ne.s32.totalorder %s83, %s85
      %p92 = scmp.eq.s32.totalorder %s33, 1
      %p93 = por %p91, %p92
      %p94 = scmp.ne.s32.totalorder %s85, %s86
      %p95 = scmp.eq.s32.totalorder %s33, 0
      %p96 = por %p94, %p95
      %p97 = scmp.ne.s32.totalorder %s85, %s86
      %p98 = scmp.eq.s32.totalorder %s34, 1
      %p99 = por %p97, %p98
      %p101 = scmp.ne.s32.totalorder %s86, %s100
      %p102 = scmp.eq.s32.totalorder %s34, 0
      %p103 = por %p101, %p102
      %s105 = sadd.s32 %s104, 1
      %p108 = scmp.eq.s32.totalorder %s28, 1
      %p109 = scmp.ne.s32.totalorder %s104, %s106
      %p110 = scmp.eq.s32.totalorder %s28, 0
      %p111 = por %p109, %p110
      %p112 = scmp.ne.s32.totalorder %s104, %s106
      %p113 = scmp.eq.s32.totalorder %s33, 1
      %p114 = por %p112, %p113
      %p115 = scmp.ne.s32.totalorder %s106, %s107
      %p116 = scmp.eq.s32.totalorder %s33, 0
      %p117 = por %p115, %p116
      %p118 = scmp.ne.s32.totalorder %s106, %s107
      %p119 = scmp.eq.s32.totalorder %s34, 1
      %p120 = por %p118, %p119
      %p122 = scmp.ne.s32.totalorder %s107, %s121
      %p123 = scmp.eq.s32.totalorder %s34, 0
      %p124 = por %p122, %p123
      %s126 = sadd.s32 %s125, 1
      %p129 = scmp.eq.s32.totalorder %s28, 1
      %p130 = scmp.ne.s32.totalorder %s125, %s127
      %p131 = scmp.eq.s32.totalorder %s28, 0
      %p132 = por %p130, %p131
      %p133 = scmp.ne.s32.totalorder %s125, %s127
      %p134 = scmp.eq.s32.totalorder %s33, 1
      %p135 = por %p133, %p134
      %p136 = scmp.ne.s32.totalorder %s127, %s128
      %p137 = scmp.eq.s32.totalorder %s33, 0
      %p138 = por %p136, %p137
      %p139 = scmp.ne.s32.totalorder %s127, %s128
      %p140 = scmp.eq.s32.totalorder %s34, 1
      %p141 = por %p139, %p140
      %p143 = scmp.ne.s32.totalorder %s128, %s142
      %p144 = scmp.eq.s32.totalorder %s34, 0
      %p145 = por %p143, %p144
      %s147 = sadd.s32 %s146, 1
      %p150 = scmp.eq.s32.totalorder %s28, 1
      %p151 = scmp.ne.s32.totalorder %s146, %s148
      %p152 = scmp.eq.s32.totalorder %s28, 0
      %p153 = por %p151, %p152
      %p154 = scmp.ne.s32.totalorder %s146, %s148
      %p155 = scmp.eq.s32.totalorder %s33, 1
      %p156 = por %p154, %p155
      %p157 = scmp.ne.s32.totalorder %s148, %s149
      %p158 = scmp.eq.s32.totalorder %s33, 0
      %p159 = por %p157, %p158
      %p160 = scmp.ne.s32.totalorder %s148, %s149
      %p161 = scmp.eq.s32.totalorder %s34, 1
      %p162 = por %p160, %p161
      %p164 = scmp.ne.s32.totalorder %s149, %s163
      %p165 = scmp.eq.s32.totalorder %s34, 0
      %p166 = por %p164, %p165
      %s168 = sadd.s32 %s167, 1
      %p171 = scmp.eq.s32.totalorder %s28, 1
      %p172 = scmp.ne.s32.totalorder %s167, %s169
      %p173 = scmp.eq.s32.totalorder %s28, 0
      %p174 = por %p172, %p173
      %p175 = scmp.ne.s32.totalorder %s167, %s169
      %p176 = scmp.eq.s32.totalorder %s33, 1
      %p177 = por %p175, %p176
      %p178 = scmp.ne.s32.totalorder %s169, %s170
      %p179 = scmp.eq.s32.totalorder %s33, 0
      %p180 = por %p178, %p179
      %p181 = scmp.ne.s32.totalorder %s169, %s170
      %p182 = scmp.eq.s32.totalorder %s34, 1
      %p183 = por %p181, %p182
      %p185 = scmp.ne.s32.totalorder %s170, %s184
      %p186 = scmp.eq.s32.totalorder %s34, 0
      %p187 = por %p185, %p186
      %s189 = sadd.s32 %s188, 1
      %p192 = scmp.eq.s32.totalorder %s28, 1
      %p193 = scmp.ne.s32.totalorder %s188, %s190
      %p194 = scmp.eq.s32.totalorder %s28, 0
      %p195 = por %p193, %p194
      %p196 = scmp.ne.s32.totalorder %s188, %s190
      %p197 = scmp.eq.s32.totalorder %s33, 1
      %p198 = por %p196, %p197
      %p199 = scmp.ne.s32.totalorder %s190, %s191
      %p200 = scmp.eq.s32.totalorder %s33, 0
      %p201 = por %p199, %p200
      %p202 = scmp.ne.s32.totalorder %s190, %s191
      %p203 = scmp.eq.s32.totalorder %s34, 1
      %p204 = por %p202, %p203
      %p206 = scmp.ne.s32.totalorder %s191, %s205
      %p207 = scmp.eq.s32.totalorder %s34, 0
      %p208 = por %p206, %p207
      %s210 = sadd.s32 %s209, 1
      %p213 = scmp.eq.s32.totalorder %s28, 1
      %p214 = scmp.ne.s32.totalorder %s209, %s211
      %p215 = scmp.eq.s32.totalorder %s28, 0
      %p216 = por %p214, %p215
      %p217 = scmp.ne.s32.totalorder %s209, %s211
      %p218 = scmp.eq.s32.totalorder %s33, 1
      %p219 = por %p217, %p218
      %p220 = scmp.ne.s32.totalorder %s211, %s212
      %p221 = scmp.eq.s32.totalorder %s33, 0
      %p222 = por %p220, %p221
      %p223 = scmp.ne.s32.totalorder %s211, %s212
      %p224 = scmp.eq.s32.totalorder %s34, 1
      %p225 = por %p223, %p224
      %p227 = scmp.ne.s32.totalorder %s212, %s226
      %p228 = scmp.eq.s32.totalorder %s34, 0
      %p229 = por %p227, %p228
      %s231 = sadd.s32 %s230, 1
      %p234 = scmp.eq.s32.totalorder %s28, 1
      %p235 = scmp.ne.s32.totalorder %s230, %s232
      %p236 = scmp.eq.s32.totalorder %s28, 0
      %p237 = por %p235, %p236
      %p238 = scmp.ne.s32.totalorder %s230, %s232
      %p239 = scmp.eq.s32.totalorder %s33, 1
      %p240 = por %p238, %p239
      %p241 = scmp.ne.s32.totalorder %s232, %s233
      %p242 = scmp.eq.s32.totalorder %s33, 0
      %p243 = por %p241, %p242
      %p244 = scmp.ne.s32.totalorder %s232, %s233
      %p245 = scmp.eq.s32.totalorder %s34, 1
      %p246 = por %p244, %p245
      %p248 = scmp.ne.s32.totalorder %s233, %s247
      %p249 = scmp.eq.s32.totalorder %s34, 0
      %p250 = por %p248, %p249
      %s252 = sadd.s32 %s251, 1
      %p255 = scmp.eq.s32.totalorder %s28, 1
      %p256 = scmp.ne.s32.totalorder %s251, %s253
      %p257 = scmp.eq.s32.totalorder %s28, 0
      %p258 = por %p256, %p257
      %p259 = scmp.ne.s32.totalorder %s251, %s253
      %p260 = scmp.eq.s32.totalorder %s33, 1
      %p261 = por %p259, %p260
      %p262 = scmp.ne.s32.totalorder %s253, %s254
      %p263 = scmp.eq.s32.totalorder %s33, 0
      %p264 = por %p262, %p263
      %p265 = scmp.ne.s32.totalorder %s253, %s254
      %p266 = scmp.eq.s32.totalorder %s34, 1
      %p267 = por %p265, %p266
      %p269 = scmp.ne.s32.totalorder %s254, %s268
      %p270 = scmp.eq.s32.totalorder %s34, 0
      %p271 = por %p269, %p270
      %s273 = sadd.s32 %s272, 1
      %p276 = scmp.eq.s32.totalorder %s28, 1
      %p277 = scmp.ne.s32.totalorder %s272, %s274
      %p278 = scmp.eq.s32.totalorder %s28, 0
      %p279 = por %p277, %p278
      %p280 = scmp.ne.s32.totalorder %s272, %s274
      %p281 = scmp.eq.s32.totalorder %s33, 1
      %p282 = por %p280, %p281
      %p283 = scmp.ne.s32.totalorder %s274, %s275
      %p284 = scmp.eq.s32.totalorder %s33, 0
      %p285 = por %p283, %p284
      %p286 = scmp.ne.s32.totalorder %s274, %s275
      %p287 = scmp.eq.s32.totalorder %s34, 1
      %p288 = por %p286, %p287
      %p290 = scmp.ne.s32.totalorder %s275, %s289
      %p291 = scmp.eq.s32.totalorder %s34, 0
      %p292 = por %p290, %p291
      %s294 = sadd.s32 %s293, 1
      %p297 = scmp.eq.s32.totalorder %s28, 1
      %p298 = scmp.ne.s32.totalorder %s293, %s295
      %p299 = scmp.eq.s32.totalorder %s28, 0
      %p300 = por %p298, %p299
      %p301 = scmp.ne.s32.totalorder %s293, %s295
      %p302 = scmp.eq.s32.totalorder %s33, 1
      %p303 = por %p301, %p302
      %p304 = scmp.ne.s32.totalorder %s295, %s296
      %p305 = scmp.eq.s32.totalorder %s33, 0
      %p306 = por %p304, %p305
      %p307 = scmp.ne.s32.totalorder %s295, %s296
      %p308 = scmp.eq.s32.totalorder %s34, 1
      %p309 = por %p307, %p308
      %p311 = scmp.ne.s32.totalorder %s296, %s310
      %p312 = scmp.eq.s32.totalorder %s34, 0
      %p313 = por %p311, %p312
      %s314 = ssub.s32 %s28, %s35
      %p315 = scmp.eq.s32.totalorder %s314, 0
      %s317 = sadd.s32 %s316, 1
      %s318 = scalar_select %p315, %s316, %s317
      %p321 = pneg %p315
      %p322 = scmp.eq.s32.totalorder %s28, 1
      %p323 = por %p321, %p322
      %p324 = scmp.ne.s32.totalorder %s316, %s319
      %p325 = scmp.eq.s32.totalorder %s28, 0
      %p326 = por %p324, %p325
      %p327 = scmp.ne.s32.totalorder %s316, %s319
      %p328 = scmp.eq.s32.totalorder %s33, 1
      %p329 = por %p327, %p328
      %p330 = scmp.ne.s32.totalorder %s319, %s320
      %p331 = scmp.eq.s32.totalorder %s33, 0
      %p332 = por %p330, %p331
      %p333 = scmp.ne.s32.totalorder %s319, %s320
      %p334 = scmp.eq.s32.totalorder %s34, 1
      %p335 = por %p333, %p334
      %p337 = scmp.ne.s32.totalorder %s320, %s336
      %p338 = scmp.eq.s32.totalorder %s34, 0
      %p339 = por %p337, %p338
      %p340 = scmp.le.s32.totalorder 1, %s28
      %p341 = scmp.lt.s32.totalorder %s28, 3
      %p342 = pnand %p340, %p341
      %p343 = pneg %p342
      // Predicated region
      $region9: #{tpu_custom_call.1} parent=5 // pred_check
        _
      $region10: #{tpu_custom_call.1} parent=5 // pred_check_branch
        %345 = sbr.rel (%p342) target = $region12
      $region11: #{tpu_custom_call.1} parent=5 // pred_region
        %s346 = ssub.s32 %s28, 1
        // Predicated region
        $region13: #{tpu_custom_call.1} parent=11 // pred_check
          %p347 = pneg %p75
        $region14: #{tpu_custom_call.1} parent=11 // pred_check_branch
          %349 = sbr.rel (%p347) target = $region16
        $region15: #{tpu_custom_call.1} parent=11 // pred_region
          %s351 = ssub.s32 8192, 8192
          %352 = vsyncadd [#allocation6], %s351
          %s353 = sshll.u32 [#allocation5], 4
          %s354 = int_to_ptr.vmem [resolvable:$true] %s353
          %359 = dma.hbm_to_vmem [thread:$0]  %s1, 8192, %s354, [#allocation6], 256, 256, 16
        $region16: #{tpu_custom_call.1} parent=11 // pred_fallthru
          _
        // Predicated region
        $region17: #{tpu_custom_call.1} parent=11 // pred_check
          %p360 = pneg %p96
        $region18: #{tpu_custom_call.1} parent=11 // pred_check_branch
          %362 = sbr.rel (%p360) target = $region20
        $region19: #{tpu_custom_call.1} parent=11 // pred_region
          _
        $region20: #{tpu_custom_call.1} parent=11 // pred_fallthru
          _
        // Predicated region
        $region21: #{tpu_custom_call.1} parent=11 // pred_check
          %p363 = pneg %p117
        $region22: #{tpu_custom_call.1} parent=11 // pred_check_branch
          %365 = sbr.rel (%p363) target = $region24
        $region23: #{tpu_custom_call.1} parent=11 // pred_region
          _
        $region24: #{tpu_custom_call.1} parent=11 // pred_fallthru
          _
        // Predicated region
        $region25: #{tpu_custom_call.1} parent=11 // pred_check
          %p366 = pneg %p138
        $region26: #{tpu_custom_call.1} parent=11 // pred_check_branch
          %368 = sbr.rel (%p366) target = $region28
        $region27: #{tpu_custom_call.1} parent=11 // pred_region
          %s370 = ssub.s32 16384, 16384
          %371 = vsyncadd [#allocation6], %s370
          %s372 = sshll.u32 [#allocation7], 4
          %s373 = int_to_ptr.vmem [resolvable:$true] %s372
          %378 = dma.hbm_to_vmem [thread:$0]  %s4, 16384, %s373, [#allocation6], 512, 512, 32
        $region28: #{tpu_custom_call.1} parent=11 // pred_fallthru
          _
        // Predicated region
        $region29: #{tpu_custom_call.1} parent=11 // pred_check
          %p379 = pneg %p159
        $region30: #{tpu_custom_call.1} parent=11 // pred_check_branch
          %381 = sbr.rel (%p379) target = $region32
        $region31: #{tpu_custom_call.1} parent=11 // pred_region
          _
        $region32: #{tpu_custom_call.1} parent=11 // pred_fallthru
          _
        // Predicated region
        $region33: #{tpu_custom_call.1} parent=11 // pred_check
          %p382 = pneg %p180
        $region34: #{tpu_custom_call.1} parent=11 // pred_check_branch
          %384 = sbr.rel (%p382) target = $region36
        $region35: #{tpu_custom_call.1} parent=11 // pred_region
          %s386 = ssub.s32 8192, 8192
          %387 = vsyncadd [#allocation9], %s386
          %s388 = sshll.u32 [#allocation8], 4
          %s389 = int_to_ptr.vmem [resolvable:$true] %s388
          %394 = dma.hbm_to_vmem [thread:$0]  %s6, 8192, %s389, [#allocation9], 256, 256, 16
        $region36: #{tpu_custom_call.1} parent=11 // pred_fallthru
          _
        // Predicated region
        $region37: #{tpu_custom_call.1} parent=11 // pred_check
          %p395 = pneg %p201
        $region38: #{tpu_custom_call.1} parent=11 // pred_check_branch
          %397 = sbr.rel (%p395) target = $region40
        $region39: #{tpu_custom_call.1} parent=11 // pred_region
          _
        $region40: #{tpu_custom_call.1} parent=11 // pred_fallthru
          _
        // Predicated region
        $region41: #{tpu_custom_call.1} parent=11 // pred_check
          %p398 = pneg %p222
        $region42: #{tpu_custom_call.1} parent=11 // pred_check_branch
          %400 = sbr.rel (%p398) target = $region44
        $region43: #{tpu_custom_call.1} parent=11 // pred_region
          _
        $region44: #{tpu_custom_call.1} parent=11 // pred_fallthru
          _
        // Predicated region
        $region45: #{tpu_custom_call.1} parent=11 // pred_check
          %p401 = pneg %p243
        $region46: #{tpu_custom_call.1} parent=11 // pred_check_branch
          %403 = sbr.rel (%p401) target = $region48
        $region47: #{tpu_custom_call.1} parent=11 // pred_region
          %s405 = ssub.s32 8192, 8192
          %406 = vsyncadd [#allocation9], %s405
          %s407 = sshll.u32 [#allocation10], 4
          %s408 = int_to_ptr.vmem [resolvable:$true] %s407
          %413 = dma.hbm_to_vmem [thread:$0]  %s9, 8192, %s408, [#allocation9], 256, 256, 16
        $region48: #{tpu_custom_call.1} parent=11 // pred_fallthru
          _
        // Predicated region
        $region49: #{tpu_custom_call.1} parent=11 // pred_check
          %p414 = pneg %p264
        $region50: #{tpu_custom_call.1} parent=11 // pred_check_branch
          %416 = sbr.rel (%p414) target = $region52
        $region51: #{tpu_custom_call.1} parent=11 // pred_region
          _
        $region52: #{tpu_custom_call.1} parent=11 // pred_fallthru
          _
        // Predicated region
        $region53: #{tpu_custom_call.1} parent=11 // pred_check
          %p417 = pneg %p285
        $region54: #{tpu_custom_call.1} parent=11 // pred_check_branch
          %419 = sbr.rel (%p417) target = $region56
        $region55: #{tpu_custom_call.1} parent=11 // pred_region
          %s421 = ssub.s32 8192, 8192
          %422 = vsyncadd [#allocation12], %s421
          %s423 = sshll.u32 [#allocation11], 4
          %s424 = int_to_ptr.vmem [resolvable:$true] %s423
          %429 = dma.hbm_to_vmem [thread:$0]  %s11, 8192, %s424, [#allocation12], 256, 256, 16
        $region56: #{tpu_custom_call.1} parent=11 // pred_fallthru
          _
        // Predicated region
        $region57: #{tpu_custom_call.1} parent=11 // pred_check
          %p430 = pneg %p306
        $region58: #{tpu_custom_call.1} parent=11 // pred_check_branch
          %432 = sbr.rel (%p430) target = $region60
        $region59: #{tpu_custom_call.1} parent=11 // pred_region
          _
        $region60: #{tpu_custom_call.1} parent=11 // pred_fallthru
          _
      $region12: #{tpu_custom_call.1} parent=5 // pred_fallthru
        _
      %p433 = scmp.lt.s32.totalorder %s28, 2
      // Predicated region
      $region61: #{tpu_custom_call.1} parent=5 // pred_check
        %p434 = pneg %p433
      $region62: #{tpu_custom_call.1} parent=5 // pred_check_branch
        %436 = sbr.rel (%p434) target = $region64
      $region63: #{tpu_custom_call.1} parent=5 // pred_region
        // Predicated region
        $region65: #{tpu_custom_call.1} parent=63 // pred_check
          %p437 = pneg %p48
        $region66: #{tpu_custom_call.1} parent=63 // pred_check_branch
          %439 = sbr.rel (%p437) target = $region68
        $region67: #{tpu_custom_call.1} parent=63 // pred_region
          %s440 = sand.u32 %s38, 1
          %s441 = scalar_lea.sflag [#allocation3], %s440
          %s442 = sand.u32 %s38, 1
          %s443 = smul.addr %s442, 32
          %s444 = scalar_lea.vmem [#allocation2], %s443
          %s445 = smul.u32 2, %s28
          %s447 = ssub.s32 512, 512
          %448 = vsyncadd %s441, %s447
          %s449 = smul.addr %s445, 2
          %s450 = smul.addr %s449, 128
          %s451 = scalar_lea.hbm %s0, %s450
          %s452 = sshll.u32 %s444, 4
          %s453 = int_to_ptr.vmem [resolvable:$true] %s452
          %458 = dma.hbm_to_vmem [thread:$0]  %s451, 512, %s453, %s441, 256, 256, 16
        $region68: #{tpu_custom_call.1} parent=63 // pred_fallthru
          _
      $region64: #{tpu_custom_call.1} parent=5 // pred_fallthru
        _
      %p459 = scmp.le.s32.totalorder 1, %s28
      %p460 = scmp.lt.s32.totalorder %s28, 3
      %p461 = pnand %p459, %p460
      %p462 = pneg %p461
      // Predicated region
      $region69: #{tpu_custom_call.1} parent=5 // pred_check
        _
      $region70: #{tpu_custom_call.1} parent=5 // pred_check_branch
        %464 = sbr.rel (%p461) target = $region72
      $region71: #{tpu_custom_call.1} parent=5 // pred_region
        %s465 = ssub.s32 %s28, 1
        %s466 = sand.u32 %s41, 1
        %s467 = scalar_lea.sflag [#allocation3], %s466
        %s468 = sand.u32 %s41, 1
        %s469 = smul.addr %s468, 32
        %s470 = scalar_lea.vmem [#allocation2], %s469
        // Predicated region
        $region73: #{tpu_custom_call.1} parent=71 // pred_check
          %p471 = pneg %p54
        $region74: #{tpu_custom_call.1} parent=71 // pred_check_branch
          %473 = sbr.rel (%p471) target = $region76
        $region75: #{tpu_custom_call.1} parent=71 // pred_region
          %474 = dma.done %s467, 512
        $region76: #{tpu_custom_call.1} parent=71 // pred_fallthru
          _
        // Predicated region
        $region77: #{tpu_custom_call.1} parent=71 // pred_check
          %p475 = pneg %p75
        $region78: #{tpu_custom_call.1} parent=71 // pred_check_branch
          %477 = sbr.rel (%p475) target = $region80
        $region79: #{tpu_custom_call.1} parent=71 // pred_region
          %478 = dma.done [#allocation6], 8192
        $region80: #{tpu_custom_call.1} parent=71 // pred_fallthru
          _
        // Predicated region
        $region81: #{tpu_custom_call.1} parent=71 // pred_check
          %p479 = pneg %p138
        $region82: #{tpu_custom_call.1} parent=71 // pred_check_branch
          %481 = sbr.rel (%p479) target = $region84
        $region83: #{tpu_custom_call.1} parent=71 // pred_region
          %482 = dma.done [#allocation6], 16384
        $region84: #{tpu_custom_call.1} parent=71 // pred_fallthru
          _
        // Predicated region
        $region85: #{tpu_custom_call.1} parent=71 // pred_check
          %p483 = pneg %p180
        $region86: #{tpu_custom_call.1} parent=71 // pred_check_branch
          %485 = sbr.rel (%p483) target = $region88
        $region87: #{tpu_custom_call.1} parent=71 // pred_region
          %486 = dma.done [#allocation9], 8192
        $region88: #{tpu_custom_call.1} parent=71 // pred_fallthru
          _
        // Predicated region
        $region89: #{tpu_custom_call.1} parent=71 // pred_check
          %p487 = pneg %p243
        $region90: #{tpu_custom_call.1} parent=71 // pred_check_branch
          %489 = sbr.rel (%p487) target = $region92
        $region91: #{tpu_custom_call.1} parent=71 // pred_region
          %490 = dma.done [#allocation9], 8192
        $region92: #{tpu_custom_call.1} parent=71 // pred_fallthru
          _
        // Predicated region
        $region93: #{tpu_custom_call.1} parent=71 // pred_check
          %p491 = pneg %p285
        $region94: #{tpu_custom_call.1} parent=71 // pred_check_branch
          %493 = sbr.rel (%p491) target = $region96
        $region95: #{tpu_custom_call.1} parent=71 // pred_region
          %494 = dma.done [#allocation12], 8192
        $region96: #{tpu_custom_call.1} parent=71 // pred_fallthru
          _
        %s495 = sand.u32 %s41, 1
        %s496 = scalar_lea.sflag [#allocation3], %s495
        %s497 = sand.u32 %s41, 1
        %s498 = smul.addr %s497, 32
        %s499 = scalar_lea.vmem [#allocation2], %s498
        %p500 = pneg %p54
        %p501 = pneg %p51
        %p502 = pneg %p75
        %p503 = pneg %p72
        %p504 = pneg %p96
        %p505 = pneg %p93
        %p506 = pneg %p117
        %p507 = pneg %p114
        %p508 = pneg %p138
        %p509 = pneg %p135
        %p510 = pneg %p159
        %p511 = pneg %p156
        %p512 = pneg %p180
        %p513 = pneg %p177
        %p514 = pneg %p201
        %p515 = pneg %p198
        %p516 = pneg %p222
        %p517 = pneg %p219
        %p518 = pneg %p243
        %p519 = pneg %p240
        %p520 = pneg %p264
        %p521 = pneg %p261
        %p522 = pneg %p285
        %p523 = pneg %p282
        %p524 = pneg %p306
        %p525 = pneg %p303
        %p526 = pneg %p332
        %p527 = pneg %p329
        %s528 = sand.u32 %s319, 1
        %s529 = scalar_lea.sflag [#allocation4], %s528
        %s530 = sand.u32 %s319, 1
        %s531 = smul.addr %s530, 32
        %s532 = scalar_lea.vmem [#allocation13], %s531
        %s533 = smul.u32 2, %s33
        %s534 = smul.u32 2, %s33
        %v535 = vld [vmem:[%s470] sm:$0xff]
        %v536 = vld [vmem:[%s470 + $0x8] sm:$0xff]
        %v537 = vld [vmem:[%s470 + $0x10] sm:$0xff]
        %v538 = vld [vmem:[%s470 + $0x18] sm:$0xff]
        %v539 = vld [vmem:[#allocation5] sm:$0xff]
        %v540 = vld [vmem:[#allocation5 + $0x8] sm:$0xff]
        %v541 = vld [vmem:[#allocation5 + $0x10] sm:$0xff]
        %v542 = vld [vmem:[#allocation5 + $0x18] sm:$0xff]
        %v543 = vld [vmem:[#allocation5 + $0x20] sm:$0xff]
        %v544 = vld [vmem:[#allocation5 + $0x28] sm:$0xff]
        %v545 = vld [vmem:[#allocation5 + $0x30] sm:$0xff]
        %v546 = vld [vmem:[#allocation5 + $0x38] sm:$0xff]
        %v547 = vld [vmem:[#allocation5 + $0x40] sm:$0xff]
        %v548 = vld [vmem:[#allocation5 + $0x48] sm:$0xff]
        %v549 = vld [vmem:[#allocation5 + $0x50] sm:$0xff]
        %v550 = vld [vmem:[#allocation5 + $0x58] sm:$0xff]
        %v551 = vld [vmem:[#allocation5 + $0x60] sm:$0xff]
        %v552 = vld [vmem:[#allocation5 + $0x68] sm:$0xff]
        %v553 = vld [vmem:[#allocation5 + $0x70] sm:$0xff]
        %v554 = vld [vmem:[#allocation5 + $0x78] sm:$0xff]
        %v555 = vld [vmem:[#allocation5 + $0x80] sm:$0xff]
        %v556 = vld [vmem:[#allocation5 + $0x88] sm:$0xff]
        %v557 = vld [vmem:[#allocation5 + $0x90] sm:$0xff]
        %v558 = vld [vmem:[#allocation5 + $0x98] sm:$0xff]
        %v559 = vld [vmem:[#allocation5 + $0xa0] sm:$0xff]
        %v560 = vld [vmem:[#allocation5 + $0xa8] sm:$0xff]
        %v561 = vld [vmem:[#allocation5 + $0xb0] sm:$0xff]
        %v562 = vld [vmem:[#allocation5 + $0xb8] sm:$0xff]
        %v563 = vld [vmem:[#allocation5 + $0xc0] sm:$0xff]
        %v564 = vld [vmem:[#allocation5 + $0xc8] sm:$0xff]
        %v565 = vld [vmem:[#allocation5 + $0xd0] sm:$0xff]
        %v566 = vld [vmem:[#allocation5 + $0xd8] sm:$0xff]
        %v567 = vld [vmem:[#allocation5 + $0xe0] sm:$0xff]
        %v568 = vld [vmem:[#allocation5 + $0xe8] sm:$0xff]
        %v569 = vld [vmem:[#allocation5 + $0xf0] sm:$0xff]
        %v570 = vld [vmem:[#allocation5 + $0xf8] sm:$0xff]
        %v571 = vld [vmem:[#allocation5 + $0x100] sm:$0xff]
        %v572 = vld [vmem:[#allocation5 + $0x108] sm:$0xff]
        %v573 = vld [vmem:[#allocation5 + $0x110] sm:$0xff]
        %v574 = vld [vmem:[#allocation5 + $0x118] sm:$0xff]
        %v575 = vld [vmem:[#allocation5 + $0x120] sm:$0xff]
        %v576 = vld [vmem:[#allocation5 + $0x128] sm:$0xff]
        %v577 = vld [vmem:[#allocation5 + $0x130] sm:$0xff]
        %v578 = vld [vmem:[#allocation5 + $0x138] sm:$0xff]
        %v579 = vld [vmem:[#allocation5 + $0x140] sm:$0xff]
        %v580 = vld [vmem:[#allocation5 + $0x148] sm:$0xff]
        %v581 = vld [vmem:[#allocation5 + $0x150] sm:$0xff]
        %v582 = vld [vmem:[#allocation5 + $0x158] sm:$0xff]
        %v583 = vld [vmem:[#allocation5 + $0x160] sm:$0xff]
        %v584 = vld [vmem:[#allocation5 + $0x168] sm:$0xff]
        %v585 = vld [vmem:[#allocation5 + $0x170] sm:$0xff]
        %v586 = vld [vmem:[#allocation5 + $0x178] sm:$0xff]
        %v587 = vld [vmem:[#allocation5 + $0x180] sm:$0xff]
        %v588 = vld [vmem:[#allocation5 + $0x188] sm:$0xff]
        %v589 = vld [vmem:[#allocation5 + $0x190] sm:$0xff]
        %v590 = vld [vmem:[#allocation5 + $0x198] sm:$0xff]
        %v591 = vld [vmem:[#allocation5 + $0x1a0] sm:$0xff]
        %v592 = vld [vmem:[#allocation5 + $0x1a8] sm:$0xff]
        %v593 = vld [vmem:[#allocation5 + $0x1b0] sm:$0xff]
        %v594 = vld [vmem:[#allocation5 + $0x1b8] sm:$0xff]
        %v595 = vld [vmem:[#allocation5 + $0x1c0] sm:$0xff]
        %v596 = vld [vmem:[#allocation5 + $0x1c8] sm:$0xff]
        %v597 = vld [vmem:[#allocation5 + $0x1d0] sm:$0xff]
        %v598 = vld [vmem:[#allocation5 + $0x1d8] sm:$0xff]
        %v599 = vld [vmem:[#allocation5 + $0x1e0] sm:$0xff]
        %v600 = vld [vmem:[#allocation5 + $0x1e8] sm:$0xff]
        %v601 = vld [vmem:[#allocation5 + $0x1f0] sm:$0xff]
        %v602 = vld [vmem:[#allocation5 + $0x1f8] sm:$0xff]
        %603 = vmatprep.subr.mxu0 %v540
        %604 = vmatpush1.msra.mxu0 %v539
        %605 = vmatprep.subr.mxu0 %v542
        %606 = vmatpush1.msra.mxu0 %v541
        %607 = vmatprep.subr.mxu0 %v544
        %608 = vmatpush1.msra.mxu0 %v543
        %609 = vmatprep.subr.mxu0 %v546
        %610 = vmatpush1.msra.mxu0 %v545
        %611 = vmatprep.subr.mxu0 %v548
        %612 = vmatpush1.msra.mxu0 %v547
        %613 = vmatprep.subr.mxu0 %v550
        %614 = vmatpush1.msra.mxu0 %v549
        %615 = vmatprep.subr.mxu0 %v552
        %616 = vmatpush1.msra.mxu0 %v551
        %617 = vmatprep.subr.mxu0 %v554
        %618 = vmatpush1.msra.mxu0 %v553
        %619 = vmatprep.subr.mxu0 %v556
        %620 = vmatpush1.msra.mxu0 %v555
        %621 = vmatprep.subr.mxu0 %v558
        %622 = vmatpush1.msra.mxu0 %v557
        %623 = vmatprep.subr.mxu0 %v560
        %624 = vmatpush1.msra.mxu0 %v559
        %625 = vmatprep.subr.mxu0 %v562
        %626 = vmatpush1.msra.mxu0 %v561
        %627 = vmatprep.subr.mxu0 %v564
        %628 = vmatpush1.msra.mxu0 %v563
        %629 = vmatprep.subr.mxu0 %v566
        %630 = vmatpush1.msra.mxu0 %v565
        %631 = vmatprep.subr.mxu0 %v568
        %632 = vmatpush1.msra.mxu0 %v567
        %633 = vmatprep.subr.mxu0 %v570
        %634 = vmatpush1.msra.mxu0 %v569
        %635 = vmatprep.subr.mxu0 %v572
        %636 = vmatpush1.msra.mxu0 %v571
        %637 = vmatprep.subr.mxu0 %v574
        %638 = vmatpush1.msra.mxu0 %v573
        %639 = vmatprep.subr.mxu0 %v576
        %640 = vmatpush1.msra.mxu0 %v575
        %641 = vmatprep.subr.mxu0 %v578
        %642 = vmatpush1.msra.mxu0 %v577
        %643 = vmatprep.subr.mxu0 %v580
        %644 = vmatpush1.msra.mxu0 %v579
        %645 = vmatprep.subr.mxu0 %v582
        %646 = vmatpush1.msra.mxu0 %v581
        %647 = vmatprep.subr.mxu0 %v584
        %648 = vmatpush1.msra.mxu0 %v583
        %649 = vmatprep.subr.mxu0 %v586
        %650 = vmatpush1.msra.mxu0 %v585
        %651 = vmatprep.subr.mxu0 %v588
        %652 = vmatpush1.msra.mxu0 %v587
        %653 = vmatprep.subr.mxu0 %v590
        %654 = vmatpush1.msra.mxu0 %v589
        %655 = vmatprep.subr.mxu0 %v592
        %656 = vmatpush1.msra.mxu0 %v591
        %657 = vmatprep.subr.mxu0 %v594
        %658 = vmatpush1.msra.mxu0 %v593
        %659 = vmatprep.subr.mxu0 %v596
        %660 = vmatpush1.msra.mxu0 %v595
        %661 = vmatprep.subr.mxu0 %v598
        %662 = vmatpush1.msra.mxu0 %v597
        %663 = vmatprep.subr.mxu0 %v600
        %664 = vmatpush1.msra.mxu0 %v599
        %665 = vmatprep.subr.mxu0 %v602
        %666 = vmatpush1.msra.mxu0 %v601
        %667 = vmatprep.mubr.f32.mxu0 %v536
        %668 = vmatmul.mubr.f32.gmra.mrb[0].mxu0 %v535
        %v669 = vpop.f32.mrb[0].mxu0
        %v670 = vadd.f32 0.0, %v669
        %v671 = vpop.f32.mrb[0].mxu0
        %v672 = vadd.f32 0.0, %v671
        %673 = vmatprep.mubr.f32.mxu0 %v538
        %674 = vmatmul.mubr.f32.gmra.mrb[0].mxu0 %v537
        %v675 = vpop.f32.mrb[0].mxu0
        %v676 = vadd.f32 0.0, %v675
        %v677 = vpop.f32.mrb[0].mxu0
        %v678 = vadd.f32 0.0, %v677
        %679 = vdwg.mxu0
        %v680 = vsub.f32 %v535, %v670
        %v681 = vsub.f32 %v536, %v672
        %v682 = vsub.f32 %v537, %v676
        %v683 = vsub.f32 %v538, %v678
        %v684 = vmul.f32 %v680, %v680
        %v685 = vmul.f32 %v681, %v681
        %v686 = vmul.f32 %v682, %v682
        %v687 = vmul.f32 %v683, %v683
        %688 = vmatprep.subr.mxu0 %v540
        %689 = vmatpush1.msra.mxu0 %v539
        %690 = vmatprep.subr.mxu0 %v542
        %691 = vmatpush1.msra.mxu0 %v541
        %692 = vmatprep.subr.mxu0 %v544
        %693 = vmatpush1.msra.mxu0 %v543
        %694 = vmatprep.subr.mxu0 %v546
        %695 = vmatpush1.msra.mxu0 %v545
        %696 = vmatprep.subr.mxu0 %v548
        %697 = vmatpush1.msra.mxu0 %v547
        %698 = vmatprep.subr.mxu0 %v550
        %699 = vmatpush1.msra.mxu0 %v549
        %700 = vmatprep.subr.mxu0 %v552
        %701 = vmatpush1.msra.mxu0 %v551
        %702 = vmatprep.subr.mxu0 %v554
        %703 = vmatpush1.msra.mxu0 %v553
        %704 = vmatprep.subr.mxu0 %v556
        %705 = vmatpush1.msra.mxu0 %v555
        %706 = vmatprep.subr.mxu0 %v558
        %707 = vmatpush1.msra.mxu0 %v557
        %708 = vmatprep.subr.mxu0 %v560
        %709 = vmatpush1.msra.mxu0 %v559
        %710 = vmatprep.subr.mxu0 %v562
        %711 = vmatpush1.msra.mxu0 %v561
        %712 = vmatprep.subr.mxu0 %v564
        %713 = vmatpush1.msra.mxu0 %v563
        %714 = vmatprep.subr.mxu0 %v566
        %715 = vmatpush1.msra.mxu0 %v565
        %716 = vmatprep.subr.mxu0 %v568
        %717 = vmatpush1.msra.mxu0 %v567
        %718 = vmatprep.subr.mxu0 %v570
        %719 = vmatpush1.msra.mxu0 %v569
        %720 = vmatprep.subr.mxu0 %v572
        %721 = vmatpush1.msra.mxu0 %v571
        %722 = vmatprep.subr.mxu0 %v574
        %723 = vmatpush1.msra.mxu0 %v573
        %724 = vmatprep.subr.mxu0 %v576
        %725 = vmatpush1.msra.mxu0 %v575
        %726 = vmatprep.subr.mxu0 %v578
        %727 = vmatpush1.msra.mxu0 %v577
        %728 = vmatprep.subr.mxu0 %v580
        %729 = vmatpush1.msra.mxu0 %v579
        %730 = vmatprep.subr.mxu0 %v582
        %731 = vmatpush1.msra.mxu0 %v581
        %732 = vmatprep.subr.mxu0 %v584
        %733 = vmatpush1.msra.mxu0 %v583
        %734 = vmatprep.subr.mxu0 %v586
        %735 = vmatpush1.msra.mxu0 %v585
        %736 = vmatprep.subr.mxu0 %v588
        %737 = vmatpush1.msra.mxu0 %v587
        %738 = vmatprep.subr.mxu0 %v590
        %739 = vmatpush1.msra.mxu0 %v589
        %740 = vmatprep.subr.mxu0 %v592
        %741 = vmatpush1.msra.mxu0 %v591
        %742 = vmatprep.subr.mxu0 %v594
        %743 = vmatpush1.msra.mxu0 %v593
        %744 = vmatprep.subr.mxu0 %v596
        %745 = vmatpush1.msra.mxu0 %v595
        %746 = vmatprep.subr.mxu0 %v598
        %747 = vmatpush1.msra.mxu0 %v597
        %748 = vmatprep.subr.mxu0 %v600
        %749 = vmatpush1.msra.mxu0 %v599
        %750 = vmatprep.subr.mxu0 %v602
        %751 = vmatpush1.msra.mxu0 %v601
        %752 = vmatprep.mubr.f32.mxu0 %v685
        %753 = vmatmul.mubr.f32.gmra.mrb[0].mxu0 %v684
        %v754 = vpop.f32.mrb[0].mxu0
        %v755 = vadd.f32 1e-05, %v754
        %v756 = vpop.f32.mrb[0].mxu0
        %v757 = vadd.f32 1e-05, %v756
        %758 = vmatprep.mubr.f32.mxu0 %v687
        %759 = vmatmul.mubr.f32.gmra.mrb[0].mxu0 %v686
        %v760 = vpop.f32.mrb[0].mxu0
        %v761 = vadd.f32 1e-05, %v760
        %v762 = vpop.f32.mrb[0].mxu0
        %v763 = vadd.f32 1e-05, %v762
        %764 = vdwg.mxu0
        %v765 = vrsqrt.pop %v755
        %v766 = vrsqrt.pop %v757
        %v767 = vrsqrt.pop %v761
        %v768 = vrsqrt.pop %v763
        %v769 = vmul.f32 %v680, %v765
        %v770 = vmul.f32 %v681, %v766
        %v771 = vmul.f32 %v682, %v767
        %v772 = vmul.f32 %v683, %v768
        %v773 = vld [vmem:[%s2] sm:$0x3]
        %v775 = vlaneseq
        %v776 = vshrl.u32 %v775, 7
        %v777 = vsub.s32 0, %v776
        %v778 = vrot.slane %v773, %v777
        %v779 = vlaneseq
        %v780 = vshrl.u32 %v779, 7
        %v781 = vsub.s32 1, %v780
        %v782 = vrot.slane %v773, %v781
        %v785 = vmul.f32 %v769, %v778
        %v786 = vmul.f32 %v770, %v782
        %v787 = vmul.f32 %v771, %v778
        %v788 = vmul.f32 %v772, %v782
        %v789 = vld [vmem:[%s3] sm:$0x3]
        %v791 = vlaneseq
        %v792 = vshrl.u32 %v791, 7
        %v793 = vsub.s32 0, %v792
        %v794 = vrot.slane %v789, %v793
        %v795 = vlaneseq
        %v796 = vshrl.u32 %v795, 7
        %v797 = vsub.s32 1, %v796
        %v798 = vrot.slane %v789, %v797
        %v801 = vadd.f32 %v785, %v794
        %v802 = vadd.f32 %v786, %v798
        %v803 = vadd.f32 %v787, %v794
        %v804 = vadd.f32 %v788, %v798
        %v805 = vld [vmem:[#allocation7] sm:$0xff]
        %v806 = vld [vmem:[#allocation7 + $0x8] sm:$0xff]
        %v807 = vld [vmem:[#allocation7 + $0x10] sm:$0xff]
        %v808 = vld [vmem:[#allocation7 + $0x18] sm:$0xff]
        %v809 = vld [vmem:[#allocation7 + $0x20] sm:$0xff]
        %v810 = vld [vmem:[#allocation7 + $0x28] sm:$0xff]
        %v811 = vld [vmem:[#allocation7 + $0x30] sm:$0xff]
        %v812 = vld [vmem:[#allocation7 + $0x38] sm:$0xff]
        %v813 = vld [vmem:[#allocation7 + $0x40] sm:$0xff]
        %v814 = vld [vmem:[#allocation7 + $0x48] sm:$0xff]
        %v815 = vld [vmem:[#allocation7 + $0x50] sm:$0xff]
        %v816 = vld [vmem:[#allocation7 + $0x58] sm:$0xff]
        %v817 = vld [vmem:[#allocation7 + $0x60] sm:$0xff]
        %v818 = vld [vmem:[#allocation7 + $0x68] sm:$0xff]
        %v819 = vld [vmem:[#allocation7 + $0x70] sm:$0xff]
        %v820 = vld [vmem:[#allocation7 + $0x78] sm:$0xff]
        %v821 = vld [vmem:[#allocation7 + $0x80] sm:$0xff]
        %v822 = vld [vmem:[#allocation7 + $0x88] sm:$0xff]
        %v823 = vld [vmem:[#allocation7 + $0x90] sm:$0xff]
        %v824 = vld [vmem:[#allocation7 + $0x98] sm:$0xff]
        %v825 = vld [vmem:[#allocation7 + $0xa0] sm:$0xff]
        %v826 = vld [vmem:[#allocation7 + $0xa8] sm:$0xff]
        %v827 = vld [vmem:[#allocation7 + $0xb0] sm:$0xff]
        %v828 = vld [vmem:[#allocation7 + $0xb8] sm:$0xff]
        %v829 = vld [vmem:[#allocation7 + $0xc0] sm:$0xff]
        %v830 = vld [vmem:[#allocation7 + $0xc8] sm:$0xff]
        %v831 = vld [vmem:[#allocation7 + $0xd0] sm:$0xff]
        %v832 = vld [vmem:[#allocation7 + $0xd8] sm:$0xff]
        %v833 = vld [vmem:[#allocation7 + $0xe0] sm:$0xff]
        %v834 = vld [vmem:[#allocation7 + $0xe8] sm:$0xff]
        %v835 = vld [vmem:[#allocation7 + $0xf0] sm:$0xff]
        %v836 = vld [vmem:[#allocation7 + $0xf8] sm:$0xff]
        %v837 = vld [vmem:[#allocation7 + $0x100] sm:$0xff]
        %v838 = vld [vmem:[#allocation7 + $0x108] sm:$0xff]
        %v839 = vld [vmem:[#allocation7 + $0x110] sm:$0xff]
        %v840 = vld [vmem:[#allocation7 + $0x118] sm:$0xff]
        %v841 = vld [vmem:[#allocation7 + $0x120] sm:$0xff]
        %v842 = vld [vmem:[#allocation7 + $0x128] sm:$0xff]
        %v843 = vld [vmem:[#allocation7 + $0x130] sm:$0xff]
        %v844 = vld [vmem:[#allocation7 + $0x138] sm:$0xff]
        %v845 = vld [vmem:[#allocation7 + $0x140] sm:$0xff]
        %v846 = vld [vmem:[#allocation7 + $0x148] sm:$0xff]
        %v847 = vld [vmem:[#allocation7 + $0x150] sm:$0xff]
        %v848 = vld [vmem:[#allocation7 + $0x158] sm:$0xff]
        %v849 = vld [vmem:[#allocation7 + $0x160] sm:$0xff]
        %v850 = vld [vmem:[#allocation7 + $0x168] sm:$0xff]
        %v851 = vld [vmem:[#allocation7 + $0x170] sm:$0xff]
        %v852 = vld [vmem:[#allocation7 + $0x178] sm:$0xff]
        %v853 = vld [vmem:[#allocation7 + $0x180] sm:$0xff]
        %v854 = vld [vmem:[#allocation7 + $0x188] sm:$0xff]
        %v855 = vld [vmem:[#allocation7 + $0x190] sm:$0xff]
        %v856 = vld [vmem:[#allocation7 + $0x198] sm:$0xff]
        %v857 = vld [vmem:[#allocation7 + $0x1a0] sm:$0xff]
        %v858 = vld [vmem:[#allocation7 + $0x1a8] sm:$0xff]
        %v859 = vld [vmem:[#allocation7 + $0x1b0] sm:$0xff]
        %v860 = vld [vmem:[#allocation7 + $0x1b8] sm:$0xff]
        %v861 = vld [vmem:[#allocation7 + $0x1c0] sm:$0xff]
        %v862 = vld [vmem:[#allocation7 + $0x1c8] sm:$0xff]
        %v863 = vld [vmem:[#allocation7 + $0x1d0] sm:$0xff]
        %v864 = vld [vmem:[#allocation7 + $0x1d8] sm:$0xff]
        %v865 = vld [vmem:[#allocation7 + $0x1e0] sm:$0xff]
        %v866 = vld [vmem:[#allocation7 + $0x1e8] sm:$0xff]
        %v867 = vld [vmem:[#allocation7 + $0x1f0] sm:$0xff]
        %v868 = vld [vmem:[#allocation7 + $0x1f8] sm:$0xff]
        %v869 = vld [vmem:[#allocation7 + $0x200] sm:$0xff]
        %v870 = vld [vmem:[#allocation7 + $0x208] sm:$0xff]
        %v871 = vld [vmem:[#allocation7 + $0x210] sm:$0xff]
        %v872 = vld [vmem:[#allocation7 + $0x218] sm:$0xff]
        %v873 = vld [vmem:[#allocation7 + $0x220] sm:$0xff]
        %v874 = vld [vmem:[#allocation7 + $0x228] sm:$0xff]
        %v875 = vld [vmem:[#allocation7 + $0x230] sm:$0xff]
        %v876 = vld [vmem:[#allocation7 + $0x238] sm:$0xff]
        %v877 = vld [vmem:[#allocation7 + $0x240] sm:$0xff]
        %v878 = vld [vmem:[#allocation7 + $0x248] sm:$0xff]
        %v879 = vld [vmem:[#allocation7 + $0x250] sm:$0xff]
        %v880 = vld [vmem:[#allocation7 + $0x258] sm:$0xff]
        %v881 = vld [vmem:[#allocation7 + $0x260] sm:$0xff]
        %v882 = vld [vmem:[#allocation7 + $0x268] sm:$0xff]
        %v883 = vld [vmem:[#allocation7 + $0x270] sm:$0xff]
        %v884 = vld [vmem:[#allocation7 + $0x278] sm:$0xff]
        %v885 = vld [vmem:[#allocation7 + $0x280] sm:$0xff]
        %v886 = vld [vmem:[#allocation7 + $0x288] sm:$0xff]
        %v887 = vld [vmem:[#allocation7 + $0x290] sm:$0xff]
        %v888 = vld [vmem:[#allocation7 + $0x298] sm:$0xff]
        %v889 = vld [vmem:[#allocation7 + $0x2a0] sm:$0xff]
        %v890 = vld [vmem:[#allocation7 + $0x2a8] sm:$0xff]
        %v891 = vld [vmem:[#allocation7 + $0x2b0] sm:$0xff]
        %v892 = vld [vmem:[#allocation7 + $0x2b8] sm:$0xff]
        %v893 = vld [vmem:[#allocation7 + $0x2c0] sm:$0xff]
        %v894 = vld [vmem:[#allocation7 + $0x2c8] sm:$0xff]
        %v895 = vld [vmem:[#allocation7 + $0x2d0] sm:$0xff]
        %v896 = vld [vmem:[#allocation7 + $0x2d8] sm:$0xff]
        %v897 = vld [vmem:[#allocation7 + $0x2e0] sm:$0xff]
        %v898 = vld [vmem:[#allocation7 + $0x2e8] sm:$0xff]
        %v899 = vld [vmem:[#allocation7 + $0x2f0] sm:$0xff]
        %v900 = vld [vmem:[#allocation7 + $0x2f8] sm:$0xff]
        %v901 = vld [vmem:[#allocation7 + $0x300] sm:$0xff]
        %v902 = vld [vmem:[#allocation7 + $0x308] sm:$0xff]
        %v903 = vld [vmem:[#allocation7 + $0x310] sm:$0xff]
        %v904 = vld [vmem:[#allocation7 + $0x318] sm:$0xff]
        %v905 = vld [vmem:[#allocation7 + $0x320] sm:$0xff]
        %v906 = vld [vmem:[#allocation7 + $0x328] sm:$0xff]
        %v907 = vld [vmem:[#allocation7 + $0x330] sm:$0xff]
        %v908 = vld [vmem:[#allocation7 + $0x338] sm:$0xff]
        %v909 = vld [vmem:[#allocation7 + $0x340] sm:$0xff]
        %v910 = vld [vmem:[#allocation7 + $0x348] sm:$0xff]
        %v911 = vld [vmem:[#allocation7 + $0x350] sm:$0xff]
        %v912 = vld [vmem:[#allocation7 + $0x358] sm:$0xff]
        %v913 = vld [vmem:[#allocation7 + $0x360] sm:$0xff]
        %v914 = vld [vmem:[#allocation7 + $0x368] sm:$0xff]
        %v915 = vld [vmem:[#allocation7 + $0x370] sm:$0xff]
        %v916 = vld [vmem:[#allocation7 + $0x378] sm:$0xff]
        %v917 = vld [vmem:[#allocation7 + $0x380] sm:$0xff]
        %v918 = vld [vmem:[#allocation7 + $0x388] sm:$0xff]
        %v919 = vld [vmem:[#allocation7 + $0x390] sm:$0xff]
        %v920 = vld [vmem:[#allocation7 + $0x398] sm:$0xff]
        %v921 = vld [vmem:[#allocation7 + $0x3a0] sm:$0xff]
        %v922 = vld [vmem:[#allocation7 + $0x3a8] sm:$0xff]
        %v923 = vld [vmem:[#allocation7 + $0x3b0] sm:$0xff]
        %v924 = vld [vmem:[#allocation7 + $0x3b8] sm:$0xff]
        %v925 = vld [vmem:[#allocation7 + $0x3c0] sm:$0xff]
        %v926 = vld [vmem:[#allocation7 + $0x3c8] sm:$0xff]
        %v927 = vld [vmem:[#allocation7 + $0x3d0] sm:$0xff]
        %v928 = vld [vmem:[#allocation7 + $0x3d8] sm:$0xff]
        %v929 = vld [vmem:[#allocation7 + $0x3e0] sm:$0xff]
        %v930 = vld [vmem:[#allocation7 + $0x3e8] sm:$0xff]
        %v931 = vld [vmem:[#allocation7 + $0x3f0] sm:$0xff]
        %v932 = vld [vmem:[#allocation7 + $0x3f8] sm:$0xff]
        %v933 = vld [vmem:[%s5] sm:$0xf]
        %v935 = vlaneseq
        %v936 = vshrl.u32 %v935, 7
        %v937 = vsub.s32 0, %v936
        %v938 = vrot.slane %v933, %v937
        %v939 = vlaneseq
        %v940 = vshrl.u32 %v939, 7
        %v941 = vsub.s32 1, %v940
        %v942 = vrot.slane %v933, %v941
        %v943 = vlaneseq
        %v944 = vshrl.u32 %v943, 7
        %v945 = vsub.s32 2, %v944
        %v946 = vrot.slane %v933, %v945
        %v947 = vlaneseq
        %v948 = vshrl.u32 %v947, 7
        %v949 = vsub.s32 3, %v948
        %v950 = vrot.slane %v933, %v949
        %955 = vmatprep.subr.mxu0 %v806
        %956 = vmatpush1.msra.mxu0 %v805
        %957 = vmatprep.subr.mxu0 %v810
        %958 = vmatpush1.msra.mxu0 %v809
        %959 = vmatprep.subr.mxu0 %v814
        %960 = vmatpush1.msra.mxu0 %v813
        %961 = vmatprep.subr.mxu0 %v818
        %962 = vmatpush1.msra.mxu0 %v817
        %963 = vmatprep.subr.mxu0 %v822
        %964 = vmatpush1.msra.mxu0 %v821
        %965 = vmatprep.subr.mxu0 %v826
        %966 = vmatpush1.msra.mxu0 %v825
        %967 = vmatprep.subr.mxu0 %v830
        %968 = vmatpush1.msra.mxu0 %v829
        %969 = vmatprep.subr.mxu0 %v834
        %970 = vmatpush1.msra.mxu0 %v833
        %971 = vmatprep.subr.mxu0 %v838
        %972 = vmatpush1.msra.mxu0 %v837
        %973 = vmatprep.subr.mxu0 %v842
        %974 = vmatpush1.msra.mxu0 %v841
        %975 = vmatprep.subr.mxu0 %v846
        %976 = vmatpush1.msra.mxu0 %v845
        %977 = vmatprep.subr.mxu0 %v850
        %978 = vmatpush1.msra.mxu0 %v849
        %979 = vmatprep.subr.mxu0 %v854
        %980 = vmatpush1.msra.mxu0 %v853
        %981 = vmatprep.subr.mxu0 %v858
        %982 = vmatpush1.msra.mxu0 %v857
        %983 = vmatprep.subr.mxu0 %v862
        %984 = vmatpush1.msra.mxu0 %v861
        %985 = vmatprep.subr.mxu0 %v866
        %986 = vmatpush1.msra.mxu0 %v865
        %987 = vmatprep.subr.mxu0 %v870
        %988 = vmatpush1.msra.mxu0 %v869
        %989 = vmatprep.subr.mxu0 %v874
        %990 = vmatpush1.msra.mxu0 %v873
        %991 = vmatprep.subr.mxu0 %v878
        %992 = vmatpush1.msra.mxu0 %v877
        %993 = vmatprep.subr.mxu0 %v882
        %994 = vmatpush1.msra.mxu0 %v881
        %995 = vmatprep.subr.mxu0 %v886
        %996 = vmatpush1.msra.mxu0 %v885
        %997 = vmatprep.subr.mxu0 %v890
        %998 = vmatpush1.msra.mxu0 %v889
        %999 = vmatprep.subr.mxu0 %v894
        %1000 = vmatpush1.msra.mxu0 %v893
        %1001 = vmatprep.subr.mxu0 %v898
        %1002 = vmatpush1.msra.mxu0 %v897
        %1003 = vmatprep.subr.mxu0 %v902
        %1004 = vmatpush1.msra.mxu0 %v901
        %1005 = vmatprep.subr.mxu0 %v906
        %1006 = vmatpush1.msra.mxu0 %v905
        %1007 = vmatprep.subr.mxu0 %v910
        %1008 = vmatpush1.msra.mxu0 %v909
        %1009 = vmatprep.subr.mxu0 %v914
        %1010 = vmatpush1.msra.mxu0 %v913
        %1011 = vmatprep.subr.mxu0 %v918
        %1012 = vmatpush1.msra.mxu0 %v917
        %1013 = vmatprep.subr.mxu0 %v922
        %1014 = vmatpush1.msra.mxu0 %v921
        %1015 = vmatprep.subr.mxu0 %v926
        %1016 = vmatpush1.msra.mxu0 %v925
        %1017 = vmatprep.subr.mxu0 %v930
        %1018 = vmatpush1.msra.mxu0 %v929
        %1019 = vmatprep.mubr.f32.mxu0 %v802
        %1020 = vmatmul.mubr.f32.gmra.mrb[0].mxu0 %v801
        %v1021 = vpop.f32.mrb[0].mxu0
        %v1022 = vadd.f32 %v938, %v1021
        %v1023 = vpop.f32.mrb[0].mxu0
        %v1024 = vadd.f32 %v942, %v1023
        %1025 = vmatprep.mubr.f32.mxu0 %v804
        %1026 = vmatmul.mubr.f32.gmra.mrb[0].mxu0 %v803
        %v1027 = vpop.f32.mrb[0].mxu0
        %v1028 = vadd.f32 %v938, %v1027
        %v1029 = vpop.f32.mrb[0].mxu0
        %v1030 = vadd.f32 %v942, %v1029
        %1031 = vdwg.mxu0
        %1032 = vmatprep.subr.mxu0 %v808
        %1033 = vmatpush1.msra.mxu0 %v807
        %1034 = vmatprep.subr.mxu0 %v812
        %1035 = vmatpush1.msra.mxu0 %v811
        %1036 = vmatprep.subr.mxu0 %v816
        %1037 = vmatpush1.msra.mxu0 %v815
        %1038 = vmatprep.subr.mxu0 %v820
        %1039 = vmatpush1.msra.mxu0 %v819
        %1040 = vmatprep.subr.mxu0 %v824
        %1041 = vmatpush1.msra.mxu0 %v823
        %1042 = vmatprep.subr.mxu0 %v828
        %1043 = vmatpush1.msra.mxu0 %v827
        %1044 = vmatprep.subr.mxu0 %v832
        %1045 = vmatpush1.msra.mxu0 %v831
        %1046 = vmatprep.subr.mxu0 %v836
        %1047 = vmatpush1.msra.mxu0 %v835
        %1048 = vmatprep.subr.mxu0 %v840
        %1049 = vmatpush1.msra.mxu0 %v839
        %1050 = vmatprep.subr.mxu0 %v844
        %1051 = vmatpush1.msra.mxu0 %v843
        %1052 = vmatprep.subr.mxu0 %v848
        %1053 = vmatpush1.msra.mxu0 %v847
        %1054 = vmatprep.subr.mxu0 %v852
        %1055 = vmatpush1.msra.mxu0 %v851
        %1056 = vmatprep.subr.mxu0 %v856
        %1057 = vmatpush1.msra.mxu0 %v855
        %1058 = vmatprep.subr.mxu0 %v860
        %1059 = vmatpush1.msra.mxu0 %v859
        %1060 = vmatprep.subr.mxu0 %v864
        %1061 = vmatpush1.msra.mxu0 %v863
        %1062 = vmatprep.subr.mxu0 %v868
        %1063 = vmatpush1.msra.mxu0 %v867
        %1064 = vmatprep.subr.mxu0 %v872
        %1065 = vmatpush1.msra.mxu0 %v871
        %1066 = vmatprep.subr.mxu0 %v876
        %1067 = vmatpush1.msra.mxu0 %v875
        %1068 = vmatprep.subr.mxu0 %v880
        %1069 = vmatpush1.msra.mxu0 %v879
        %1070 = vmatprep.subr.mxu0 %v884
        %1071 = vmatpush1.msra.mxu0 %v883
        %1072 = vmatprep.subr.mxu0 %v888
        %1073 = vmatpush1.msra.mxu0 %v887
        %1074 = vmatprep.subr.mxu0 %v892
        %1075 = vmatpush1.msra.mxu0 %v891
        %1076 = vmatprep.subr.mxu0 %v896
        %1077 = vmatpush1.msra.mxu0 %v895
        %1078 = vmatprep.subr.mxu0 %v900
        %1079 = vmatpush1.msra.mxu0 %v899
        %1080 = vmatprep.subr.mxu0 %v904
        %1081 = vmatpush1.msra.mxu0 %v903
        %1082 = vmatprep.subr.mxu0 %v908
        %1083 = vmatpush1.msra.mxu0 %v907
        %1084 = vmatprep.subr.mxu0 %v912
        %1085 = vmatpush1.msra.mxu0 %v911
        %1086 = vmatprep.subr.mxu0 %v916
        %1087 = vmatpush1.msra.mxu0 %v915
        %1088 = vmatprep.subr.mxu0 %v920
        %1089 = vmatpush1.msra.mxu0 %v919
        %1090 = vmatprep.subr.mxu0 %v924
        %1091 = vmatpush1.msra.mxu0 %v923
        %1092 = vmatprep.subr.mxu0 %v928
        %1093 = vmatpush1.msra.mxu0 %v927
        %1094 = vmatprep.subr.mxu0 %v932
        %1095 = vmatpush1.msra.mxu0 %v931
        %1096 = vmatprep.mubr.f32.mxu0 %v802
        %1097 = vmatmul.mubr.f32.gmra.mrb[0].mxu0 %v801
        %v1098 = vpop.f32.mrb[0].mxu0
        %v1099 = vadd.f32 %v946, %v1098
        %v1100 = vpop.f32.mrb[0].mxu0
        %v1101 = vadd.f32 %v950, %v1100
        %1102 = vmatprep.mubr.f32.mxu0 %v804
        %1103 = vmatmul.mubr.f32.gmra.mrb[0].mxu0 %v803
        %v1104 = vpop.f32.mrb[0].mxu0
        %v1105 = vadd.f32 %v946, %v1104
        %v1106 = vpop.f32.mrb[0].mxu0
        %v1107 = vadd.f32 %v950, %v1106
        %1108 = vdwg.mxu0
        %v1109 = vmul.f32 %v1022, %v1022
        %v1110 = vmul.f32 %v1024, %v1024
        %v1111 = vmul.f32 %v1099, %v1099
        %v1112 = vmul.f32 %v1101, %v1101
        %v1113 = vmul.f32 %v1028, %v1028
        %v1114 = vmul.f32 %v1030, %v1030
        %v1115 = vmul.f32 %v1105, %v1105
        %v1116 = vmul.f32 %v1107, %v1107
        %v1117 = vmul.f32 %v1109, %v1022
        %v1118 = vmul.f32 %v1110, %v1024
        %v1119 = vmul.f32 %v1111, %v1099
        %v1120 = vmul.f32 %v1112, %v1101
        %v1121 = vmul.f32 %v1113, %v1028
        %v1122 = vmul.f32 %v1114, %v1030
        %v1123 = vmul.f32 %v1115, %v1105
        %v1124 = vmul.f32 %v1116, %v1107
        %v1125 = vmul.f32 %v1117, 0.044715
        %v1126 = vmul.f32 %v1118, 0.044715
        %v1127 = vmul.f32 %v1119, 0.044715
        %v1128 = vmul.f32 %v1120, 0.044715
        %v1129 = vmul.f32 %v1121, 0.044715
        %v1130 = vmul.f32 %v1122, 0.044715
        %v1131 = vmul.f32 %v1123, 0.044715
        %v1132 = vmul.f32 %v1124, 0.044715
        %v1133 = vadd.f32 %v1022, %v1125
        %v1134 = vadd.f32 %v1024, %v1126
        %v1135 = vadd.f32 %v1099, %v1127
        %v1136 = vadd.f32 %v1101, %v1128
        %v1137 = vadd.f32 %v1028, %v1129
        %v1138 = vadd.f32 %v1030, %v1130
        %v1139 = vadd.f32 %v1105, %v1131
        %v1140 = vadd.f32 %v1107, %v1132
        %v1141 = vmul.f32 %v1133, 0.7978846
        %v1142 = vmul.f32 %v1134, 0.7978846
        %v1143 = vmul.f32 %v1135, 0.7978846
        %v1144 = vmul.f32 %v1136, 0.7978846
        %v1145 = vmul.f32 %v1137, 0.7978846
        %v1146 = vmul.f32 %v1138, 0.7978846
        %v1147 = vmul.f32 %v1139, 0.7978846
        %v1148 = vmul.f32 %v1140, 0.7978846
        %v1149 = vmul.f32 %v1022, 0.5
        %v1150 = vmul.f32 %v1024, 0.5
        %v1151 = vmul.f32 %v1099, 0.5
        %v1152 = vmul.f32 %v1101, 0.5
        %v1153 = vmul.f32 %v1028, 0.5
        %v1154 = vmul.f32 %v1030, 0.5
        %v1155 = vmul.f32 %v1105, 0.5
        %v1156 = vmul.f32 %v1107, 0.5
        %v1157 = vtanh.pop %v1141
        %v1158 = vtanh.pop %v1142
        %v1159 = vtanh.pop %v1143
        %v1160 = vtanh.pop %v1144
        %v1161 = vtanh.pop %v1145
        %v1162 = vtanh.pop %v1146
        %v1163 = vtanh.pop %v1147
        %v1164 = vtanh.pop %v1148
        %v1165 = vadd.f32 %v1157, 1.0
        %v1166 = vadd.f32 %v1158, 1.0
        %v1167 = vadd.f32 %v1159, 1.0
        %v1168 = vadd.f32 %v1160, 1.0
        %v1169 = vadd.f32 %v1161, 1.0
        %v1170 = vadd.f32 %v1162, 1.0
        %v1171 = vadd.f32 %v1163, 1.0
        %v1172 = vadd.f32 %v1164, 1.0
        %v1173 = vmul.f32 %v1149, %v1165
        %v1174 = vmul.f32 %v1150, %v1166
        %v1175 = vmul.f32 %v1151, %v1167
        %v1176 = vmul.f32 %v1152, %v1168
        %v1177 = vmul.f32 %v1153, %v1169
        %v1178 = vmul.f32 %v1154, %v1170
        %v1179 = vmul.f32 %v1155, %v1171
        %v1180 = vmul.f32 %v1156, %v1172
        %v1181 = vld [vmem:[#allocation8] sm:$0xff]
        %v1182 = vld [vmem:[#allocation8 + $0x8] sm:$0xff]
        %v1183 = vld [vmem:[#allocation8 + $0x10] sm:$0xff]
        %v1184 = vld [vmem:[#allocation8 + $0x18] sm:$0xff]
        %v1185 = vld [vmem:[#allocation8 + $0x20] sm:$0xff]
        %v1186 = vld [vmem:[#allocation8 + $0x28] sm:$0xff]
        %v1187 = vld [vmem:[#allocation8 + $0x30] sm:$0xff]
        %v1188 = vld [vmem:[#allocation8 + $0x38] sm:$0xff]
        %v1189 = vld [vmem:[#allocation8 + $0x40] sm:$0xff]
        %v1190 = vld [vmem:[#allocation8 + $0x48] sm:$0xff]
        %v1191 = vld [vmem:[#allocation8 + $0x50] sm:$0xff]
        %v1192 = vld [vmem:[#allocation8 + $0x58] sm:$0xff]
        %v1193 = vld [vmem:[#allocation8 + $0x60] sm:$0xff]
        %v1194 = vld [vmem:[#allocation8 + $0x68] sm:$0xff]
        %v1195 = vld [vmem:[#allocation8 + $0x70] sm:$0xff]
        %v1196 = vld [vmem:[#allocation8 + $0x78] sm:$0xff]
        %v1197 = vld [vmem:[#allocation8 + $0x80] sm:$0xff]
        %v1198 = vld [vmem:[#allocation8 + $0x88] sm:$0xff]
        %v1199 = vld [vmem:[#allocation8 + $0x90] sm:$0xff]
        %v1200 = vld [vmem:[#allocation8 + $0x98] sm:$0xff]
        %v1201 = vld [vmem:[#allocation8 + $0xa0] sm:$0xff]
        %v1202 = vld [vmem:[#allocation8 + $0xa8] sm:$0xff]
        %v1203 = vld [vmem:[#allocation8 + $0xb0] sm:$0xff]
        %v1204 = vld [vmem:[#allocation8 + $0xb8] sm:$0xff]
        %v1205 = vld [vmem:[#allocation8 + $0xc0] sm:$0xff]
        %v1206 = vld [vmem:[#allocation8 + $0xc8] sm:$0xff]
        %v1207 = vld [vmem:[#allocation8 + $0xd0] sm:$0xff]
        %v1208 = vld [vmem:[#allocation8 + $0xd8] sm:$0xff]
        %v1209 = vld [vmem:[#allocation8 + $0xe0] sm:$0xff]
        %v1210 = vld [vmem:[#allocation8 + $0xe8] sm:$0xff]
        %v1211 = vld [vmem:[#allocation8 + $0xf0] sm:$0xff]
        %v1212 = vld [vmem:[#allocation8 + $0xf8] sm:$0xff]
        %v1213 = vld [vmem:[#allocation8 + $0x100] sm:$0xff]
        %v1214 = vld [vmem:[#allocation8 + $0x108] sm:$0xff]
        %v1215 = vld [vmem:[#allocation8 + $0x110] sm:$0xff]
        %v1216 = vld [vmem:[#allocation8 + $0x118] sm:$0xff]
        %v1217 = vld [vmem:[#allocation8 + $0x120] sm:$0xff]
        %v1218 = vld [vmem:[#allocation8 + $0x128] sm:$0xff]
        %v1219 = vld [vmem:[#allocation8 + $0x130] sm:$0xff]
        %v1220 = vld [vmem:[#allocation8 + $0x138] sm:$0xff]
        %v1221 = vld [vmem:[#allocation8 + $0x140] sm:$0xff]
        %v1222 = vld [vmem:[#allocation8 + $0x148] sm:$0xff]
        %v1223 = vld [vmem:[#allocation8 + $0x150] sm:$0xff]
        %v1224 = vld [vmem:[#allocation8 + $0x158] sm:$0xff]
        %v1225 = vld [vmem:[#allocation8 + $0x160] sm:$0xff]
        %v1226 = vld [vmem:[#allocation8 + $0x168] sm:$0xff]
        %v1227 = vld [vmem:[#allocation8 + $0x170] sm:$0xff]
        %v1228 = vld [vmem:[#allocation8 + $0x178] sm:$0xff]
        %v1229 = vld [vmem:[#allocation8 + $0x180] sm:$0xff]
        %v1230 = vld [vmem:[#allocation8 + $0x188] sm:$0xff]
        %v1231 = vld [vmem:[#allocation8 + $0x190] sm:$0xff]
        %v1232 = vld [vmem:[#allocation8 + $0x198] sm:$0xff]
        %v1233 = vld [vmem:[#allocation8 + $0x1a0] sm:$0xff]
        %v1234 = vld [vmem:[#allocation8 + $0x1a8] sm:$0xff]
        %v1235 = vld [vmem:[#allocation8 + $0x1b0] sm:$0xff]
        %v1236 = vld [vmem:[#allocation8 + $0x1b8] sm:$0xff]
        %v1237 = vld [vmem:[#allocation8 + $0x1c0] sm:$0xff]
        %v1238 = vld [vmem:[#allocation8 + $0x1c8] sm:$0xff]
        %v1239 = vld [vmem:[#allocation8 + $0x1d0] sm:$0xff]
        %v1240 = vld [vmem:[#allocation8 + $0x1d8] sm:$0xff]
        %v1241 = vld [vmem:[#allocation8 + $0x1e0] sm:$0xff]
        %v1242 = vld [vmem:[#allocation8 + $0x1e8] sm:$0xff]
        %v1243 = vld [vmem:[#allocation8 + $0x1f0] sm:$0xff]
        %v1244 = vld [vmem:[#allocation8 + $0x1f8] sm:$0xff]
        %1245 = vmatprep.subr.mxu0 %v1182
        %1246 = vmatpush1.msra.mxu0 %v1181
        %1247 = vmatprep.subr.mxu0 %v1184
        %1248 = vmatpush1.msra.mxu0 %v1183
        %1249 = vmatprep.subr.mxu0 %v1186
        %1250 = vmatpush1.msra.mxu0 %v1185
        %1251 = vmatprep.subr.mxu0 %v1188
        %1252 = vmatpush1.msra.mxu0 %v1187
        %1253 = vmatprep.subr.mxu0 %v1190
        %1254 = vmatpush1.msra.mxu0 %v1189
        %1255 = vmatprep.subr.mxu0 %v1192
        %1256 = vmatpush1.msra.mxu0 %v1191
        %1257 = vmatprep.subr.mxu0 %v1194
        %1258 = vmatpush1.msra.mxu0 %v1193
        %1259 = vmatprep.subr.mxu0 %v1196
        %1260 = vmatpush1.msra.mxu0 %v1195
        %1261 = vmatprep.subr.mxu0 %v1198
        %1262 = vmatpush1.msra.mxu0 %v1197
        %1263 = vmatprep.subr.mxu0 %v1200
        %1264 = vmatpush1.msra.mxu0 %v1199
        %1265 = vmatprep.subr.mxu0 %v1202
        %1266 = vmatpush1.msra.mxu0 %v1201
        %1267 = vmatprep.subr.mxu0 %v1204
        %1268 = vmatpush1.msra.mxu0 %v1203
        %1269 = vmatprep.subr.mxu0 %v1206
        %1270 = vmatpush1.msra.mxu0 %v1205
        %1271 = vmatprep.subr.mxu0 %v1208
        %1272 = vmatpush1.msra.mxu0 %v1207
        %1273 = vmatprep.subr.mxu0 %v1210
        %1274 = vmatpush1.msra.mxu0 %v1209
        %1275 = vmatprep.subr.mxu0 %v1212
        %1276 = vmatpush1.msra.mxu0 %v1211
        %1277 = vmatprep.subr.mxu0 %v1214
        %1278 = vmatpush1.msra.mxu0 %v1213
        %1279 = vmatprep.subr.mxu0 %v1216
        %1280 = vmatpush1.msra.mxu0 %v1215
        %1281 = vmatprep.subr.mxu0 %v1218
        %1282 = vmatpush1.msra.mxu0 %v1217
        %1283 = vmatprep.subr.mxu0 %v1220
        %1284 = vmatpush1.msra.mxu0 %v1219
        %1285 = vmatprep.subr.mxu0 %v1222
        %1286 = vmatpush1.msra.mxu0 %v1221
        %1287 = vmatprep.subr.mxu0 %v1224
        %1288 = vmatpush1.msra.mxu0 %v1223
        %1289 = vmatprep.subr.mxu0 %v1226
        %1290 = vmatpush1.msra.mxu0 %v1225
        %1291 = vmatprep.subr.mxu0 %v1228
        %1292 = vmatpush1.msra.mxu0 %v1227
        %1293 = vmatprep.subr.mxu0 %v1230
        %1294 = vmatpush1.msra.mxu0 %v1229
        %1295 = vmatprep.subr.mxu0 %v1232
        %1296 = vmatpush1.msra.mxu0 %v1231
        %1297 = vmatprep.subr.mxu0 %v1234
        %1298 = vmatpush1.msra.mxu0 %v1233
        %1299 = vmatprep.subr.mxu0 %v1236
        %1300 = vmatpush1.msra.mxu0 %v1235
        %1301 = vmatprep.subr.mxu0 %v1238
        %1302 = vmatpush1.msra.mxu0 %v1237
        %1303 = vmatprep.subr.mxu0 %v1240
        %1304 = vmatpush1.msra.mxu0 %v1239
        %1305 = vmatprep.subr.mxu0 %v1242
        %1306 = vmatpush1.msra.mxu0 %v1241
        %1307 = vmatprep.subr.mxu0 %v1244
        %1308 = vmatpush1.msra.mxu0 %v1243
        %1309 = vmatprep.mubr.f32.mxu0 %v1176
        %1310 = vmatmul.mubr.f32.gmra.mrb[0].mxu0 %v1175
        %v1311 = vpop.f32.mrb[0].mxu0
        %v1312 = vadd.f32 0.0, %v1311
        %v1313 = vpop.f32.mrb[0].mxu0
        %v1314 = vadd.f32 0.0, %v1313
        %1315 = vmatprep.mubr.f32.mxu0 %v1180
        %1316 = vmatmul.mubr.f32.gmra.mrb[0].mxu0 %v1179
        %v1317 = vpop.f32.mrb[0].mxu0
        %v1318 = vadd.f32 0.0, %v1317
        %v1319 = vpop.f32.mrb[0].mxu0
        %v1320 = vadd.f32 0.0, %v1319
        %1321 = vdwg.mxu0
        %v1322 = vsub.f32 %v1175, %v1312
        %v1323 = vsub.f32 %v1176, %v1314
        %v1324 = vsub.f32 %v1179, %v1318
        %v1325 = vsub.f32 %v1180, %v1320
        %v1326 = vmul.f32 %v1322, %v1322
        %v1327 = vmul.f32 %v1323, %v1323
        %v1328 = vmul.f32 %v1324, %v1324
        %v1329 = vmul.f32 %v1325, %v1325
        %1330 = vmatprep.subr.mxu0 %v1182
        %1331 = vmatpush1.msra.mxu0 %v1181
        %1332 = vmatprep.subr.mxu0 %v1184
        %1333 = vmatpush1.msra.mxu0 %v1183
        %1334 = vmatprep.subr.mxu0 %v1186
        %1335 = vmatpush1.msra.mxu0 %v1185
        %1336 = vmatprep.subr.mxu0 %v1188
        %1337 = vmatpush1.msra.mxu0 %v1187
        %1338 = vmatprep.subr.mxu0 %v1190
        %1339 = vmatpush1.msra.mxu0 %v1189
        %1340 = vmatprep.subr.mxu0 %v1192
        %1341 = vmatpush1.msra.mxu0 %v1191
        %1342 = vmatprep.subr.mxu0 %v1194
        %1343 = vmatpush1.msra.mxu0 %v1193
        %1344 = vmatprep.subr.mxu0 %v1196
        %1345 = vmatpush1.msra.mxu0 %v1195
        %1346 = vmatprep.subr.mxu0 %v1198
        %1347 = vmatpush1.msra.mxu0 %v1197
        %1348 = vmatprep.subr.mxu0 %v1200
        %1349 = vmatpush1.msra.mxu0 %v1199
        %1350 = vmatprep.subr.mxu0 %v1202
        %1351 = vmatpush1.msra.mxu0 %v1201
        %1352 = vmatprep.subr.mxu0 %v1204
        %1353 = vmatpush1.msra.mxu0 %v1203
        %1354 = vmatprep.subr.mxu0 %v1206
        %1355 = vmatpush1.msra.mxu0 %v1205
        %1356 = vmatprep.subr.mxu0 %v1208
        %1357 = vmatpush1.msra.mxu0 %v1207
        %1358 = vmatprep.subr.mxu0 %v1210
        %1359 = vmatpush1.msra.mxu0 %v1209
        %1360 = vmatprep.subr.mxu0 %v1212
        %1361 = vmatpush1.msra.mxu0 %v1211
        %1362 = vmatprep.subr.mxu0 %v1214
        %1363 = vmatpush1.msra.mxu0 %v1213
        %1364 = vmatprep.subr.mxu0 %v1216
        %1365 = vmatpush1.msra.mxu0 %v1215
        %1366 = vmatprep.subr.mxu0 %v1218
        %1367 = vmatpush1.msra.mxu0 %v1217
        %1368 = vmatprep.subr.mxu0 %v1220
        %1369 = vmatpush1.msra.mxu0 %v1219
        %1370 = vmatprep.subr.mxu0 %v1222
        %1371 = vmatpush1.msra.mxu0 %v1221
        %1372 = vmatprep.subr.mxu0 %v1224
        %1373 = vmatpush1.msra.mxu0 %v1223
        %1374 = vmatprep.subr.mxu0 %v1226
        %1375 = vmatpush1.msra.mxu0 %v1225
        %1376 = vmatprep.subr.mxu0 %v1228
        %1377 = vmatpush1.msra.mxu0 %v1227
        %1378 = vmatprep.subr.mxu0 %v1230
        %1379 = vmatpush1.msra.mxu0 %v1229
        %1380 = vmatprep.subr.mxu0 %v1232
        %1381 = vmatpush1.msra.mxu0 %v1231
        %1382 = vmatprep.subr.mxu0 %v1234
        %1383 = vmatpush1.msra.mxu0 %v1233
        %1384 = vmatprep.subr.mxu0 %v1236
        %1385 = vmatpush1.msra.mxu0 %v1235
        %1386 = vmatprep.subr.mxu0 %v1238
        %1387 = vmatpush1.msra.mxu0 %v1237
        %1388 = vmatprep.subr.mxu0 %v1240
        %1389 = vmatpush1.msra.mxu0 %v1239
        %1390 = vmatprep.subr.mxu0 %v1242
        %1391 = vmatpush1.msra.mxu0 %v1241
        %1392 = vmatprep.subr.mxu0 %v1244
        %1393 = vmatpush1.msra.mxu0 %v1243
        %1394 = vmatprep.mubr.f32.mxu0 %v1327
        %1395 = vmatmul.mubr.f32.gmra.mrb[0].mxu0 %v1326
        %v1396 = vpop.f32.mrb[0].mxu0
        %v1397 = vadd.f32 1e-05, %v1396
        %v1398 = vpop.f32.mrb[0].mxu0
        %v1399 = vadd.f32 1e-05, %v1398
        %1400 = vmatprep.mubr.f32.mxu0 %v1329
        %1401 = vmatmul.mubr.f32.gmra.mrb[0].mxu0 %v1328
        %v1402 = vpop.f32.mrb[0].mxu0
        %v1403 = vadd.f32 1e-05, %v1402
        %v1404 = vpop.f32.mrb[0].mxu0
        %v1405 = vadd.f32 1e-05, %v1404
        %1406 = vdwg.mxu0
        %v1407 = vrsqrt.pop %v1397
        %v1408 = vrsqrt.pop %v1399
        %v1409 = vrsqrt.pop %v1403
        %v1410 = vrsqrt.pop %v1405
        %v1411 = vmul.f32 %v1322, %v1407
        %v1412 = vmul.f32 %v1323, %v1408
        %v1413 = vmul.f32 %v1324, %v1409
        %v1414 = vmul.f32 %v1325, %v1410
        %v1415 = vld [vmem:[%s7] sm:$0x3]
        %v1417 = vlaneseq
        %v1418 = vshrl.u32 %v1417, 7
        %v1419 = vsub.s32 0, %v1418
        %v1420 = vrot.slane %v1415, %v1419
        %v1421 = vlaneseq
        %v1422 = vshrl.u32 %v1421, 7
        %v1423 = vsub.s32 1, %v1422
        %v1424 = vrot.slane %v1415, %v1423
        %v1427 = vmul.f32 %v1411, %v1420
        %v1428 = vmul.f32 %v1412, %v1424
        %v1429 = vmul.f32 %v1413, %v1420
        %v1430 = vmul.f32 %v1414, %v1424
        %v1431 = vld [vmem:[%s8] sm:$0x3]
        %v1433 = vlaneseq
        %v1434 = vshrl.u32 %v1433, 7
        %v1435 = vsub.s32 0, %v1434
        %v1436 = vrot.slane %v1431, %v1435
        %v1437 = vlaneseq
        %v1438 = vshrl.u32 %v1437, 7
        %v1439 = vsub.s32 1, %v1438
        %v1440 = vrot.slane %v1431, %v1439
        %v1443 = vadd.f32 %v1427, %v1436
        %v1444 = vadd.f32 %v1428, %v1440
        %v1445 = vadd.f32 %v1429, %v1436
        %v1446 = vadd.f32 %v1430, %v1440
        %v1447 = vld [vmem:[#allocation10] sm:$0xff]
        %v1448 = vld [vmem:[#allocation10 + $0x8] sm:$0xff]
        %v1449 = vld [vmem:[#allocation10 + $0x10] sm:$0xff]
        %v1450 = vld [vmem:[#allocation10 + $0x18] sm:$0xff]
        %v1451 = vld [vmem:[#allocation10 + $0x20] sm:$0xff]
        %v1452 = vld [vmem:[#allocation10 + $0x28] sm:$0xff]
        %v1453 = vld [vmem:[#allocation10 + $0x30] sm:$0xff]
        %v1454 = vld [vmem:[#allocation10 + $0x38] sm:$0xff]
        %v1455 = vld [vmem:[#allocation10 + $0x40] sm:$0xff]
        %v1456 = vld [vmem:[#allocation10 + $0x48] sm:$0xff]
        %v1457 = vld [vmem:[#allocation10 + $0x50] sm:$0xff]
        %v1458 = vld [vmem:[#allocation10 + $0x58] sm:$0xff]
        %v1459 = vld [vmem:[#allocation10 + $0x60] sm:$0xff]
        %v1460 = vld [vmem:[#allocation10 + $0x68] sm:$0xff]
        %v1461 = vld [vmem:[#allocation10 + $0x70] sm:$0xff]
        %v1462 = vld [vmem:[#allocation10 + $0x78] sm:$0xff]
        %v1463 = vld [vmem:[#allocation10 + $0x80] sm:$0xff]
        %v1464 = vld [vmem:[#allocation10 + $0x88] sm:$0xff]
        %v1465 = vld [vmem:[#allocation10 + $0x90] sm:$0xff]
        %v1466 = vld [vmem:[#allocation10 + $0x98] sm:$0xff]
        %v1467 = vld [vmem:[#allocation10 + $0xa0] sm:$0xff]
        %v1468 = vld [vmem:[#allocation10 + $0xa8] sm:$0xff]
        %v1469 = vld [vmem:[#allocation10 + $0xb0] sm:$0xff]
        %v1470 = vld [vmem:[#allocation10 + $0xb8] sm:$0xff]
        %v1471 = vld [vmem:[#allocation10 + $0xc0] sm:$0xff]
        %v1472 = vld [vmem:[#allocation10 + $0xc8] sm:$0xff]
        %v1473 = vld [vmem:[#allocation10 + $0xd0] sm:$0xff]
        %v1474 = vld [vmem:[#allocation10 + $0xd8] sm:$0xff]
        %v1475 = vld [vmem:[#allocation10 + $0xe0] sm:$0xff]
        %v1476 = vld [vmem:[#allocation10 + $0xe8] sm:$0xff]
        %v1477 = vld [vmem:[#allocation10 + $0xf0] sm:$0xff]
        %v1478 = vld [vmem:[#allocation10 + $0xf8] sm:$0xff]
        %v1479 = vld [vmem:[#allocation10 + $0x100] sm:$0xff]
        %v1480 = vld [vmem:[#allocation10 + $0x108] sm:$0xff]
        %v1481 = vld [vmem:[#allocation10 + $0x110] sm:$0xff]
        %v1482 = vld [vmem:[#allocation10 + $0x118] sm:$0xff]
        %v1483 = vld [vmem:[#allocation10 + $0x120] sm:$0xff]
        %v1484 = vld [vmem:[#allocation10 + $0x128] sm:$0xff]
        %v1485 = vld [vmem:[#allocation10 + $0x130] sm:$0xff]
        %v1486 = vld [vmem:[#allocation10 + $0x138] sm:$0xff]
        %v1487 = vld [vmem:[#allocation10 + $0x140] sm:$0xff]
        %v1488 = vld [vmem:[#allocation10 + $0x148] sm:$0xff]
        %v1489 = vld [vmem:[#allocation10 + $0x150] sm:$0xff]
        %v1490 = vld [vmem:[#allocation10 + $0x158] sm:$0xff]
        %v1491 = vld [vmem:[#allocation10 + $0x160] sm:$0xff]
        %v1492 = vld [vmem:[#allocation10 + $0x168] sm:$0xff]
        %v1493 = vld [vmem:[#allocation10 + $0x170] sm:$0xff]
        %v1494 = vld [vmem:[#allocation10 + $0x178] sm:$0xff]
        %v1495 = vld [vmem:[#allocation10 + $0x180] sm:$0xff]
        %v1496 = vld [vmem:[#allocation10 + $0x188] sm:$0xff]
        %v1497 = vld [vmem:[#allocation10 + $0x190] sm:$0xff]
        %v1498 = vld [vmem:[#allocation10 + $0x198] sm:$0xff]
        %v1499 = vld [vmem:[#allocation10 + $0x1a0] sm:$0xff]
        %v1500 = vld [vmem:[#allocation10 + $0x1a8] sm:$0xff]
        %v1501 = vld [vmem:[#allocation10 + $0x1b0] sm:$0xff]
        %v1502 = vld [vmem:[#allocation10 + $0x1b8] sm:$0xff]
        %v1503 = vld [vmem:[#allocation10 + $0x1c0] sm:$0xff]
        %v1504 = vld [vmem:[#allocation10 + $0x1c8] sm:$0xff]
        %v1505 = vld [vmem:[#allocation10 + $0x1d0] sm:$0xff]
        %v1506 = vld [vmem:[#allocation10 + $0x1d8] sm:$0xff]
        %v1507 = vld [vmem:[#allocation10 + $0x1e0] sm:$0xff]
        %v1508 = vld [vmem:[#allocation10 + $0x1e8] sm:$0xff]
        %v1509 = vld [vmem:[#allocation10 + $0x1f0] sm:$0xff]
        %v1510 = vld [vmem:[#allocation10 + $0x1f8] sm:$0xff]
        %v1511 = vld [vmem:[%s10] sm:$0x3]
        %v1513 = vlaneseq
        %v1514 = vshrl.u32 %v1513, 7
        %v1515 = vsub.s32 0, %v1514
        %v1516 = vrot.slane %v1511, %v1515
        %v1517 = vlaneseq
        %v1518 = vshrl.u32 %v1517, 7
        %v1519 = vsub.s32 1, %v1518
        %v1520 = vrot.slane %v1511, %v1519
        %1523 = vmatprep.subr.mxu0 %v1448
        %1524 = vmatpush1.msra.mxu0 %v1447
        %1525 = vmatprep.subr.mxu0 %v1450
        %1526 = vmatpush1.msra.mxu0 %v1449
        %1527 = vmatprep.subr.mxu0 %v1452
        %1528 = vmatpush1.msra.mxu0 %v1451
        %1529 = vmatprep.subr.mxu0 %v1454
        %1530 = vmatpush1.msra.mxu0 %v1453
        %1531 = vmatprep.subr.mxu0 %v1456
        %1532 = vmatpush1.msra.mxu0 %v1455
        %1533 = vmatprep.subr.mxu0 %v1458
        %1534 = vmatpush1.msra.mxu0 %v1457
        %1535 = vmatprep.subr.mxu0 %v1460
        %1536 = vmatpush1.msra.mxu0 %v1459
        %1537 = vmatprep.subr.mxu0 %v1462
        %1538 = vmatpush1.msra.mxu0 %v1461
        %1539 = vmatprep.subr.mxu0 %v1464
        %1540 = vmatpush1.msra.mxu0 %v1463
        %1541 = vmatprep.subr.mxu0 %v1466
        %1542 = vmatpush1.msra.mxu0 %v1465
        %1543 = vmatprep.subr.mxu0 %v1468
        %1544 = vmatpush1.msra.mxu0 %v1467
        %1545 = vmatprep.subr.mxu0 %v1470
        %1546 = vmatpush1.msra.mxu0 %v1469
        %1547 = vmatprep.subr.mxu0 %v1472
        %1548 = vmatpush1.msra.mxu0 %v1471
        %1549 = vmatprep.subr.mxu0 %v1474
        %1550 = vmatpush1.msra.mxu0 %v1473
        %1551 = vmatprep.subr.mxu0 %v1476
        %1552 = vmatpush1.msra.mxu0 %v1475
        %1553 = vmatprep.subr.mxu0 %v1478
        %1554 = vmatpush1.msra.mxu0 %v1477
        %1555 = vmatprep.subr.mxu0 %v1480
        %1556 = vmatpush1.msra.mxu0 %v1479
        %1557 = vmatprep.subr.mxu0 %v1482
        %1558 = vmatpush1.msra.mxu0 %v1481
        %1559 = vmatprep.subr.mxu0 %v1484
        %1560 = vmatpush1.msra.mxu0 %v1483
        %1561 = vmatprep.subr.mxu0 %v1486
        %1562 = vmatpush1.msra.mxu0 %v1485
        %1563 = vmatprep.subr.mxu0 %v1488
        %1564 = vmatpush1.msra.mxu0 %v1487
        %1565 = vmatprep.subr.mxu0 %v1490
        %1566 = vmatpush1.msra.mxu0 %v1489
        %1567 = vmatprep.subr.mxu0 %v1492
        %1568 = vmatpush1.msra.mxu0 %v1491
        %1569 = vmatprep.subr.mxu0 %v1494
        %1570 = vmatpush1.msra.mxu0 %v1493
        %1571 = vmatprep.subr.mxu0 %v1496
        %1572 = vmatpush1.msra.mxu0 %v1495
        %1573 = vmatprep.subr.mxu0 %v1498
        %1574 = vmatpush1.msra.mxu0 %v1497
        %1575 = vmatprep.subr.mxu0 %v1500
        %1576 = vmatpush1.msra.mxu0 %v1499
        %1577 = vmatprep.subr.mxu0 %v1502
        %1578 = vmatpush1.msra.mxu0 %v1501
        %1579 = vmatprep.subr.mxu0 %v1504
        %1580 = vmatpush1.msra.mxu0 %v1503
        %1581 = vmatprep.subr.mxu0 %v1506
        %1582 = vmatpush1.msra.mxu0 %v1505
        %1583 = vmatprep.subr.mxu0 %v1508
        %1584 = vmatpush1.msra.mxu0 %v1507
        %1585 = vmatprep.subr.mxu0 %v1510
        %1586 = vmatpush1.msra.mxu0 %v1509
        %1587 = vmatprep.mubr.f32.mxu0 %v1444
        %1588 = vmatmul.mubr.f32.gmra.mrb[0].mxu0 %v1443
        %v1589 = vpop.f32.mrb[0].mxu0
        %v1590 = vadd.f32 %v1516, %v1589
        %v1591 = vpop.f32.mrb[0].mxu0
        %v1592 = vadd.f32 %v1520, %v1591
        %1593 = vmatprep.mubr.f32.mxu0 %v1446
        %1594 = vmatmul.mubr.f32.gmra.mrb[0].mxu0 %v1445
        %v1595 = vpop.f32.mrb[0].mxu0
        %v1596 = vadd.f32 %v1516, %v1595
        %v1597 = vpop.f32.mrb[0].mxu0
        %v1598 = vadd.f32 %v1520, %v1597
        %1599 = vdwg.mxu0
        %v1600 = vmul.f32 %v1173, %v1590
        %v1601 = vmul.f32 %v1174, %v1592
        %v1602 = vmul.f32 %v1177, %v1596
        %v1603 = vmul.f32 %v1178, %v1598
        %v1604 = vld [vmem:[#allocation11] sm:$0xff]
        %v1605 = vld [vmem:[#allocation11 + $0x8] sm:$0xff]
        %v1606 = vld [vmem:[#allocation11 + $0x10] sm:$0xff]
        %v1607 = vld [vmem:[#allocation11 + $0x18] sm:$0xff]
        %v1608 = vld [vmem:[#allocation11 + $0x20] sm:$0xff]
        %v1609 = vld [vmem:[#allocation11 + $0x28] sm:$0xff]
        %v1610 = vld [vmem:[#allocation11 + $0x30] sm:$0xff]
        %v1611 = vld [vmem:[#allocation11 + $0x38] sm:$0xff]
        %v1612 = vld [vmem:[#allocation11 + $0x40] sm:$0xff]
        %v1613 = vld [vmem:[#allocation11 + $0x48] sm:$0xff]
        %v1614 = vld [vmem:[#allocation11 + $0x50] sm:$0xff]
        %v1615 = vld [vmem:[#allocation11 + $0x58] sm:$0xff]
        %v1616 = vld [vmem:[#allocation11 + $0x60] sm:$0xff]
        %v1617 = vld [vmem:[#allocation11 + $0x68] sm:$0xff]
        %v1618 = vld [vmem:[#allocation11 + $0x70] sm:$0xff]
        %v1619 = vld [vmem:[#allocation11 + $0x78] sm:$0xff]
        %v1620 = vld [vmem:[#allocation11 + $0x80] sm:$0xff]
        %v1621 = vld [vmem:[#allocation11 + $0x88] sm:$0xff]
        %v1622 = vld [vmem:[#allocation11 + $0x90] sm:$0xff]
        %v1623 = vld [vmem:[#allocation11 + $0x98] sm:$0xff]
        %v1624 = vld [vmem:[#allocation11 + $0xa0] sm:$0xff]
        %v1625 = vld [vmem:[#allocation11 + $0xa8] sm:$0xff]
        %v1626 = vld [vmem:[#allocation11 + $0xb0] sm:$0xff]
        %v1627 = vld [vmem:[#allocation11 + $0xb8] sm:$0xff]
        %v1628 = vld [vmem:[#allocation11 + $0xc0] sm:$0xff]
        %v1629 = vld [vmem:[#allocation11 + $0xc8] sm:$0xff]
        %v1630 = vld [vmem:[#allocation11 + $0xd0] sm:$0xff]
        %v1631 = vld [vmem:[#allocation11 + $0xd8] sm:$0xff]
        %v1632 = vld [vmem:[#allocation11 + $0xe0] sm:$0xff]
        %v1633 = vld [vmem:[#allocation11 + $0xe8] sm:$0xff]
        %v1634 = vld [vmem:[#allocation11 + $0xf0] sm:$0xff]
        %v1635 = vld [vmem:[#allocation11 + $0xf8] sm:$0xff]
        %v1636 = vld [vmem:[#allocation11 + $0x100] sm:$0xff]
        %v1637 = vld [vmem:[#allocation11 + $0x108] sm:$0xff]
        %v1638 = vld [vmem:[#allocation11 + $0x110] sm:$0xff]
        %v1639 = vld [vmem:[#allocation11 + $0x118] sm:$0xff]
        %v1640 = vld [vmem:[#allocation11 + $0x120] sm:$0xff]
        %v1641 = vld [vmem:[#allocation11 + $0x128] sm:$0xff]
        %v1642 = vld [vmem:[#allocation11 + $0x130] sm:$0xff]
        %v1643 = vld [vmem:[#allocation11 + $0x138] sm:$0xff]
        %v1644 = vld [vmem:[#allocation11 + $0x140] sm:$0xff]
        %v1645 = vld [vmem:[#allocation11 + $0x148] sm:$0xff]
        %v1646 = vld [vmem:[#allocation11 + $0x150] sm:$0xff]
        %v1647 = vld [vmem:[#allocation11 + $0x158] sm:$0xff]
        %v1648 = vld [vmem:[#allocation11 + $0x160] sm:$0xff]
        %v1649 = vld [vmem:[#allocation11 + $0x168] sm:$0xff]
        %v1650 = vld [vmem:[#allocation11 + $0x170] sm:$0xff]
        %v1651 = vld [vmem:[#allocation11 + $0x178] sm:$0xff]
        %v1652 = vld [vmem:[#allocation11 + $0x180] sm:$0xff]
        %v1653 = vld [vmem:[#allocation11 + $0x188] sm:$0xff]
        %v1654 = vld [vmem:[#allocation11 + $0x190] sm:$0xff]
        %v1655 = vld [vmem:[#allocation11 + $0x198] sm:$0xff]
        %v1656 = vld [vmem:[#allocation11 + $0x1a0] sm:$0xff]
        %v1657 = vld [vmem:[#allocation11 + $0x1a8] sm:$0xff]
        %v1658 = vld [vmem:[#allocation11 + $0x1b0] sm:$0xff]
        %v1659 = vld [vmem:[#allocation11 + $0x1b8] sm:$0xff]
        %v1660 = vld [vmem:[#allocation11 + $0x1c0] sm:$0xff]
        %v1661 = vld [vmem:[#allocation11 + $0x1c8] sm:$0xff]
        %v1662 = vld [vmem:[#allocation11 + $0x1d0] sm:$0xff]
        %v1663 = vld [vmem:[#allocation11 + $0x1d8] sm:$0xff]
        %v1664 = vld [vmem:[#allocation11 + $0x1e0] sm:$0xff]
        %v1665 = vld [vmem:[#allocation11 + $0x1e8] sm:$0xff]
        %v1666 = vld [vmem:[#allocation11 + $0x1f0] sm:$0xff]
        %v1667 = vld [vmem:[#allocation11 + $0x1f8] sm:$0xff]
        %v1668 = vld [vmem:[%s12] sm:$0x3]
        %v1670 = vlaneseq
        %v1671 = vshrl.u32 %v1670, 7
        %v1672 = vsub.s32 0, %v1671
        %v1673 = vrot.slane %v1668, %v1672
        %v1674 = vlaneseq
        %v1675 = vshrl.u32 %v1674, 7
        %v1676 = vsub.s32 1, %v1675
        %v1677 = vrot.slane %v1668, %v1676
        %1680 = vmatprep.subr.mxu0 %v1605
        %1681 = vmatpush1.msra.mxu0 %v1604
        %1682 = vmatprep.subr.mxu0 %v1607
        %1683 = vmatpush1.msra.mxu0 %v1606
        %1684 = vmatprep.subr.mxu0 %v1609
        %1685 = vmatpush1.msra.mxu0 %v1608
        %1686 = vmatprep.subr.mxu0 %v1611
        %1687 = vmatpush1.msra.mxu0 %v1610
        %1688 = vmatprep.subr.mxu0 %v1613
        %1689 = vmatpush1.msra.mxu0 %v1612
        %1690 = vmatprep.subr.mxu0 %v1615
        %1691 = vmatpush1.msra.mxu0 %v1614
        %1692 = vmatprep.subr.mxu0 %v1617
        %1693 = vmatpush1.msra.mxu0 %v1616
        %1694 = vmatprep.subr.mxu0 %v1619
        %1695 = vmatpush1.msra.mxu0 %v1618
        %1696 = vmatprep.subr.mxu0 %v1621
        %1697 = vmatpush1.msra.mxu0 %v1620
        %1698 = vmatprep.subr.mxu0 %v1623
        %1699 = vmatpush1.msra.mxu0 %v1622
        %1700 = vmatprep.subr.mxu0 %v1625
        %1701 = vmatpush1.msra.mxu0 %v1624
        %1702 = vmatprep.subr.mxu0 %v1627
        %1703 = vmatpush1.msra.mxu0 %v1626
        %1704 = vmatprep.subr.mxu0 %v1629
        %1705 = vmatpush1.msra.mxu0 %v1628
        %1706 = vmatprep.subr.mxu0 %v1631
        %1707 = vmatpush1.msra.mxu0 %v1630
        %1708 = vmatprep.subr.mxu0 %v1633
        %1709 = vmatpush1.msra.mxu0 %v1632
        %1710 = vmatprep.subr.mxu0 %v1635
        %1711 = vmatpush1.msra.mxu0 %v1634
        %1712 = vmatprep.subr.mxu0 %v1637
        %1713 = vmatpush1.msra.mxu0 %v1636
        %1714 = vmatprep.subr.mxu0 %v1639
        %1715 = vmatpush1.msra.mxu0 %v1638
        %1716 = vmatprep.subr.mxu0 %v1641
        %1717 = vmatpush1.msra.mxu0 %v1640
        %1718 = vmatprep.subr.mxu0 %v1643
        %1719 = vmatpush1.msra.mxu0 %v1642
        %1720 = vmatprep.subr.mxu0 %v1645
        %1721 = vmatpush1.msra.mxu0 %v1644
        %1722 = vmatprep.subr.mxu0 %v1647
        %1723 = vmatpush1.msra.mxu0 %v1646
        %1724 = vmatprep.subr.mxu0 %v1649
        %1725 = vmatpush1.msra.mxu0 %v1648
        %1726 = vmatprep.subr.mxu0 %v1651
        %1727 = vmatpush1.msra.mxu0 %v1650
        %1728 = vmatprep.subr.mxu0 %v1653
        %1729 = vmatpush1.msra.mxu0 %v1652
        %1730 = vmatprep.subr.mxu0 %v1655
        %1731 = vmatpush1.msra.mxu0 %v1654
        %1732 = vmatprep.subr.mxu0 %v1657
        %1733 = vmatpush1.msra.mxu0 %v1656
        %1734 = vmatprep.subr.mxu0 %v1659
        %1735 = vmatpush1.msra.mxu0 %v1658
        %1736 = vmatprep.subr.mxu0 %v1661
        %1737 = vmatpush1.msra.mxu0 %v1660
        %1738 = vmatprep.subr.mxu0 %v1663
        %1739 = vmatpush1.msra.mxu0 %v1662
        %1740 = vmatprep.subr.mxu0 %v1665
        %1741 = vmatpush1.msra.mxu0 %v1664
        %1742 = vmatprep.subr.mxu0 %v1667
        %1743 = vmatpush1.msra.mxu0 %v1666
        %1744 = vmatprep.mubr.f32.mxu0 %v1601
        %1745 = vmatmul.mubr.f32.gmra.mrb[0].mxu0 %v1600
        %v1746 = vpop.f32.mrb[0].mxu0
        %v1747 = vadd.f32 %v1673, %v1746
        %v1748 = vpop.f32.mrb[0].mxu0
        %v1749 = vadd.f32 %v1677, %v1748
        %1750 = vmatprep.mubr.f32.mxu0 %v1603
        %1751 = vmatmul.mubr.f32.gmra.mrb[0].mxu0 %v1602
        %v1752 = vpop.f32.mrb[0].mxu0
        %v1753 = vadd.f32 %v1673, %v1752
        %v1754 = vpop.f32.mrb[0].mxu0
        %v1755 = vadd.f32 %v1677, %v1754
        %1756 = vdwg.mxu0
        %v1757 = vadd.f32 %v1747, %v535
        %v1758 = vadd.f32 %v1749, %v536
        %v1759 = vadd.f32 %v1753, %v537
        %v1760 = vadd.f32 %v1755, %v538
        %1761 = vst [vmem:[%s532] sm:$0xff] %v1757
        %1762 = vst [vmem:[%s532 + $0x8] sm:$0xff] %v1758
        %1763 = vst [vmem:[%s532 + $0x10] sm:$0xff] %v1759
        %1764 = vst [vmem:[%s532 + $0x18] sm:$0xff] %v1760
        %s1765 = sand.u32 %s319, 1
        %s1766 = scalar_lea.sflag [#allocation4], %s1765
        %s1767 = sand.u32 %s319, 1
        %s1768 = smul.addr %s1767, 32
        %s1769 = scalar_lea.vmem [#allocation13], %s1768
        // Predicated region
        $region97: #{tpu_custom_call.1} parent=71 // pred_check
          %p1770 = pneg %p329
        $region98: #{tpu_custom_call.1} parent=71 // pred_check_branch
          %1772 = sbr.rel (%p1770) target = $region100
        $region99: #{tpu_custom_call.1} parent=71 // pred_region
          %s1773 = smul.u32 2, %s33
          %s1775 = ssub.s32 512, 512
          %1776 = vsyncadd %s1766, %s1775
          %s1777 = smul.addr %s1773, 2
          %s1778 = smul.addr %s1777, 128
          %s1779 = scalar_lea.hbm %s13, %s1778
          %s1780 = sshll.u32 %s1769, 4
          %s1781 = int_to_ptr.vmem [resolvable:$true] %s1780
          %1786 = dma.vmem_to_hbm [thread:$0]  %s1781, 512, %s1779, %s1766, 256, 256, 16
        $region100: #{tpu_custom_call.1} parent=71 // pred_fallthru
          _
      $region72: #{tpu_custom_call.1} parent=5 // pred_fallthru
        _
      %p1787 = scmp.le.s32.totalorder 2, %s28
      // Predicated region
      $region101: #{tpu_custom_call.1} parent=5 // pred_check
        %p1788 = pneg %p1787
      $region102: #{tpu_custom_call.1} parent=5 // pred_check_branch
        %1790 = sbr.rel (%p1788) target = $region104
      $region103: #{tpu_custom_call.1} parent=5 // pred_region
        %s1791 = ssub.s32 %s28, 2
        // Predicated region
        $region105: #{tpu_custom_call.1} parent=103 // pred_check
          %p1792 = pneg %p335
        $region106: #{tpu_custom_call.1} parent=103 // pred_check_branch
          %1794 = sbr.rel (%p1792) target = $region108
        $region107: #{tpu_custom_call.1} parent=103 // pred_region
          %s1795 = sand.u32 %s320, 1
          %s1796 = scalar_lea.sflag [#allocation4], %s1795
          %s1797 = sand.u32 %s320, 1
          %s1798 = smul.addr %s1797, 32
          %s1799 = scalar_lea.vmem [#allocation13], %s1798
          %1800 = dma.done %s1796, 512
        $region108: #{tpu_custom_call.1} parent=103 // pred_fallthru
          _
      $region104: #{tpu_custom_call.1} parent=5 // pred_fallthru
        _
    $region6: #{tpu_custom_call.1} parent=1 // loop_footer
      %s32 = sadd.s32 1, %s28
    $region7: #{tpu_custom_call.1} parent=1 // loop_footer_branch
      %27 = sbr.rel target = $region3
    $region8: #{tpu_custom_call.1} parent=1 // loop_exit
      _
    %1801 = vsyncpa [#allocation3], 1
    %s1802 = scalar_lea.sflag [#allocation3], 1
    %1803 = vsyncpa %s1802, 1
    %1804 = vsyncpa [#allocation6], 1
    %1805 = vsyncpa [#allocation9], 1
    %1806 = vsyncpa [#allocation12], 1
    %1807 = vsyncpa [#allocation4], 1
    %s1808 = scalar_lea.sflag [#allocation4], 1
    %1809 = vsyncpa %s1808, 1

</llo_original>
